<compile_context>
chip_gen: v7x
topology: tpu7x:2x2x1
jax: 0.10.0
libtpu: 0.0.40
codegen_flags: <defaults>
</compile_context>

<pallas_src>
import numpy as np
import jax
import jax.numpy as jnp
from jax.experimental import pallas as pl
from jax.experimental.pallas import tpu as pltpu

EPS_NORM = 1e-12     # F.normalize eps
EPS_BN = 1e-5        # nn.BatchNorm1d eps


def _round_up(x, m):
    return ((x + m - 1) // m) * m


def _tpu_budget():
    """Scoped-VMEM limit + max lane tile from the actual chip generation."""
    try:
        cap = int(pltpu.get_tpu_info().vmem_capacity_bytes)
    except Exception:
        cap = 64 * 1024 * 1024                       # conservative (v7x-like)
    limit = min(100 * 1024 * 1024, max(32 * 1024 * 1024, (cap * 3) // 4))
    max_tile = 1024 if cap >= 100 * 1024 * 1024 else 512
    return limit, max_tile


VMEM_LIMIT, MAX_LANE_TILE = _tpu_budget()


def _plan_lanes(n, max_tile):
    """(padded_n, lane_tile): 128-multiple lane-dense tiles for large n,
    full-dim block (no (8,128) constraint) for small n."""
    if n < 256:
        return n, n
    tl = min(max_tile, _round_up(n, 128))
    return _round_up(n, tl), tl


# --------------------------------------------------------------------------
# Kernel 1: Conv1d (im2col matmul, bf16 MXU) + folded inference-BN + ReLU
# --------------------------------------------------------------------------
def _conv_bn_relu_kernel(p_ref, w_ref, s_ref, t_ref, o_ref):
    # p_ref: (1, CinK_p, TL) bf16 patch tile (Lout positions in lanes)
    # w_ref: (Cout_p, CinK_p) bf16 ; s_ref/t_ref: (Cout_p, 1) f32 scale/shift
    acc = jnp.dot(w_ref[...], p_ref[0], preferred_element_type=jnp.float32)
    o_ref[0] = jnp.maximum(acc * s_ref[...] + t_ref[...], 0.0).astype(o_ref.dtype)


def conv1d_bn_relu(x, w, b, gamma, beta, mean, var, stride, padding, *, out_dtype):
    """Conv1d (NCL) + folded inference BatchNorm1d + ReLU -> (B, Cout, Lout).

    Output stays in native (B, Cout, Lout) layout (Lout in lanes), so it feeds
    the next layer and the feature-encoder kernel with zero transposes.
    """
    # TODO(synk): BatchNorm1d uses inference-mode running stats; train-mode
    # batch statistics are not modeled.
    B, Cin, L = x.shape
    Cout, _, K = w.shape
    Lout = (L + 2 * padding - K) // stride + 1

    # im2col in bf16 as K strided slices stacked on a new tap axis: no gather,
    # no transpose; XLA fuses the slices (and the caller's normalize multiply)
    # into the single concat that materializes P = (B, Cin*K, Lout).
    xp = jnp.pad(x.astype(jnp.bfloat16), ((0, 0), (0, 0), (padding, padding)))
    span = (Lout - 1) * stride + 1
    taps = [xp[:, :, k:k + span:stride] for k in range(K)]
    P = jnp.stack(taps, axis=2).reshape(B, Cin * K, Lout)

    ckp = _round_up(Cin * K, 16)
    cop = _round_up(Cout, 16)
    lpad, tl = _plan_lanes(Lout, MAX_LANE_TILE)
    P = jnp.pad(P, ((0, 0), (0, ckp - Cin * K), (0, lpad - Lout)))
    W2 = jnp.pad(w.reshape(Cout, Cin * K).astype(jnp.bfloat16),
                 ((0, cop - Cout), (0, ckp - Cin * K)))

    # Fold Conv bias + inference BatchNorm into one scale/shift pair.
    scale = gamma * jax.lax.rsqrt(var + EPS_BN)
    shift = (b - mean) * scale + beta
    scale = jnp.pad(scale, (0, cop - Cout)).reshape(cop, 1).astype(jnp.float32)
    shift = jnp.pad(shift, (0, cop - Cout)).reshape(cop, 1).astype(jnp.float32)

    out = pl.pallas_call(
        _conv_bn_relu_kernel,
        grid=(B, lpad // tl),
        in_specs=[pl.BlockSpec((1, ckp, tl), lambda bi, j: (bi, 0, j)),
                  pl.BlockSpec((cop, ckp), lambda bi, j: (0, 0)),
                  pl.BlockSpec((cop, 1), lambda bi, j: (0, 0)),
                  pl.BlockSpec((cop, 1), lambda bi, j: (0, 0))],
        out_specs=pl.BlockSpec((1, cop, tl), lambda bi, j: (bi, 0, j)),
        out_shape=jax.ShapeDtypeStruct((B, cop, lpad), out_dtype),
        compiler_params=pltpu.CompilerParams(
            dimension_semantics=("parallel", "parallel"),
            vmem_limit_bytes=VMEM_LIMIT),
    )(P, W2, scale, shift)
    return out[:, :Cout, :Lout]


# --------------------------------------------------------------------------
# Kernel 2 (fused): F.normalize(out_cat, dim=-1) + feature encoder stand-in
#                   (1x1 Conv2d + ReLU) + AdaptiveMaxPool2d(1) +
#                   AdaptiveAvgPool2d(1) + add + final L2 normalize
# --------------------------------------------------------------------------
def _fe_pool_norm_kernel(x_ref, w_ref, b_ref, feat_ref, merge_ref):
    # x_ref   : (1, 3*H, W) f32 -- one batch row of conv_out, native NCL layout
    # w_ref   : (3, Cf_p, 1) f32 ; b_ref : (Cf_p, 1) f32
    # feat_ref: (1, Cf_p, H, W) ; merge_ref : (1, Cf_p, 1)
    x = x_ref[0]
    H = x.shape[0] // 3
    inv_hw = 1.0 / float((x.shape[0] // 3) * x.shape[1])

    # F.normalize(out_cat, dim=-1): per (chunk, channel) row over Lout (lanes).
    ss = jnp.sum(x * x, axis=-1, keepdims=True)
    xn = x * jax.lax.rsqrt(jnp.maximum(ss, EPS_NORM * EPS_NORM))

    # Stand-in feature encoder: 1x1 Conv2d over the 3 chunk channels + ReLU,
    # computed as a 3-term broadcast MAC on the VPU (H, W stay sublane/lane).
    acc = b_ref[...][:, :, None]                                    # (Cf_p, 1, 1)
    for c in range(3):
        xc = xn[c * H:(c + 1) * H, :]                               # (H, W)
        acc = acc + w_ref[c][:, :, None] * xc[None, :, :]           # (Cf_p, H, W)
    y = jnp.maximum(acc, 0.0)
    feat_ref[0] = y                                                 # out_feature

    # AdaptiveMaxPool2d(1) + AdaptiveAvgPool2d(1) + add + F.normalize(dim=-1).
    mx = jnp.max(jnp.max(y, axis=2), axis=1, keepdims=True)         # (Cf_p, 1)
    av = jnp.sum(jnp.sum(y, axis=2), axis=1, keepdims=True) * inv_hw
    merged = mx + av
    ssm = jnp.sum(merged * merged, axis=0, keepdims=True)           # (1, 1)
    merge_ref[0] = merged * jax.lax.rsqrt(jnp.maximum(ssm, EPS_NORM * EPS_NORM))


def feature_encode_pool_merge(conv_out, fe_w, fe_b):
    """conv_out (B, Ch, Lout) f32 -> (out_merge (B, Cfeat), out_feature (B, Cfeat, H, W))."""
    # TODO(synk): the real feature_encoding_step is an external CNN picked by
    # model_feature_encoder.select_feature_encoder_model (unavailable here); a
    # deterministic 1x1 Conv2d + ReLU stand-in is used instead.
    B, Ch, W = conv_out.shape
    H = Ch // 3                      # chunk(3, dim=1) + stack(dim=1) == reshape
    Cfeat = fe_w.shape[1]
    cfp = _round_up(Cfeat, 8)
    w3 = jnp.pad(fe_w.astype(jnp.float32), ((0, 0), (0, cfp - Cfeat)))[:, :, None]
    bp = jnp.pad(fe_b.astype(jnp.float32), (0, cfp - Cfeat)).reshape(cfp, 1)

    feat, merge = pl.pallas_call(
        _fe_pool_norm_kernel,
        grid=(B,),
        in_specs=[pl.BlockSpec((1, Ch, W), lambda i: (i, 0, 0)),
                  pl.BlockSpec((3, cfp, 1), lambda i: (0, 0, 0)),
                  pl.BlockSpec((cfp, 1), lambda i: (0, 0))],
        out_specs=(pl.BlockSpec((1, cfp, H, W), lambda i: (i, 0, 0, 0)),
                   pl.BlockSpec((1, cfp, 1), lambda i: (i, 0, 0))),
        out_shape=(jax.ShapeDtypeStruct((B, cfp, H, W), jnp.float32),
                   jax.ShapeDtypeStruct((B, cfp, 1), jnp.float32)),
        compiler_params=pltpu.CompilerParams(
            dimension_semantics=("parallel",),
            vmem_limit_bytes=VMEM_LIMIT),
    )(conv_out.astype(jnp.float32), w3, bp)

    out_feature = feat[:, :Cfeat]            # (B, Cfeat, H, W)
    out_merge = merge[:, :Cfeat, 0]          # (B, Cfeat)
    return out_merge, out_feature


# --------------------------------------------------------------------------
# Encoder forward
# --------------------------------------------------------------------------
def encoder_forward(x, params):
    # F.normalize(x, dim=-1, p=2): tiny XLA row-norm; the scale multiply fuses
    # into the first layer's patch build (no standalone pallas_call / extra HBM
    # round trip).
    ss = jnp.sum(x * x, axis=-1, keepdims=True)
    out = x * (1.0 / jnp.maximum(jnp.sqrt(ss), EPS_NORM))

    layers = params["conv_layers"]
    for li, layer in enumerate(layers):
        out = conv1d_bn_relu(
            out, layer["w"], layer["b"], layer["gamma"], layer["beta"],
            layer["mean"], layer["var"], layer["stride"], layer["padding"],
            out_dtype=jnp.float32 if li == len(layers) - 1 else jnp.bfloat16)
    conv_out = out                                       # (B, hidden, Lout) f32

    out_merge, out_feature = feature_encode_pool_merge(
        conv_out, params["fe_w"], params["fe_b"])
    return out_merge, [out_feature, conv_out]


# --------------------------------------------------------------------------
# Pure-JAX reference (same semantics, f32) for tolerance checking
# --------------------------------------------------------------------------
def encoder_forward_ref(x, params):
    out = x / jnp.maximum(jnp.sqrt(jnp.sum(x * x, axis=-1, keepdims=True)), EPS_NORM)
    for layer in params["conv_layers"]:
        z = jax.lax.conv_general_dilated(
            out, layer["w"], window_strides=(layer["stride"],),
            padding=[(layer["padding"], layer["padding"])],
            dimension_numbers=("NCH", "OIH", "NCH"))
        z = z + layer["b"][None, :, None]
        s = layer["gamma"] * jax.lax.rsqrt(layer["var"] + EPS_BN)
        z = (z - layer["mean"][None, :, None]) * s[None, :, None] + layer["beta"][None, :, None]
        out = jnp.maximum(z, 0.0)
    conv_out = out
    B, Ch, Lout = conv_out.shape
    oc = conv_out.reshape(B, 3, Ch // 3, Lout)
    oc = oc / jnp.maximum(jnp.sqrt(jnp.sum(oc * oc, axis=-1, keepdims=True)), EPS_NORM)
    y = jnp.einsum("cf,bchw->bfhw", params["fe_w"], oc) + params["fe_b"][None, :, None, None]
    y = jnp.maximum(y, 0.0)
    merged = jnp.max(y, axis=(2, 3)) + jnp.mean(y, axis=(2, 3))
    out_merge = merged / jnp.maximum(
        jnp.sqrt(jnp.sum(merged * merged, axis=-1, keepdims=True)), EPS_NORM)
    return out_merge, [y, conv_out]


def init_params(key, input_dim, hidden_dim, strides, filters, paddings, cfeat):
    params = {"conv_layers": []}
    cin = input_dim
    for s, k, p in zip(strides, filters, paddings):
        key, k1, k2, k3, k4, k5, k6 = jax.random.split(key, 7)
        params["conv_layers"].append({
            "w": 0.1 * jax.random.normal(k1, (hidden_dim, cin, k), jnp.float32),
            "b": 0.1 * jax.random.normal(k2, (hidden_dim,), jnp.float32),
            "gamma": 1.0 + 0.1 * jax.random.normal(k3, (hidden_dim,), jnp.float32),
            "beta": 0.1 * jax.random.normal(k4, (hidden_dim,), jnp.float32),
            "mean": 0.1 * jax.random.normal(k5, (hidden_dim,), jnp.float32),
            "var": 0.5 + jax.random.uniform(k6, (hidden_dim,), jnp.float32),
            "stride": s, "padding": p,
        })
        cin = hidden_dim
    key, k1, k2 = jax.random.split(key, 3)
    params["fe_w"] = 0.1 * jax.random.normal(k1, (3, cfeat), jnp.float32)
    params["fe_b"] = 0.1 * jax.random.normal(k2, (cfeat,), jnp.float32)
    return params


if __name__ == "__main__":
    key = jax.random.PRNGKey(0)
    key, kx, kp = jax.random.split(key, 3)

    # Small shapes consistent with the module: 1-channel raw waveform input,
    # 2-layer conv stack, hidden_dim divisible by 3 (for chunk(3, dim=1)).
    B, input_dim, L = 2, 1, 128
    hidden_dim = 12
    strides, filters, paddings = [4, 2], [8, 4], [2, 1]
    cfeat = 16

    x = jax.random.normal(kx, (B, input_dim, L), jnp.float32)
    params = init_params(kp, input_dim, hidden_dim, strides, filters, paddings, cfeat)

    fwd = jax.jit(lambda xx: encoder_forward(xx, params))
    out_merge, (out_feature, conv_out) = fwd(x)
    jax.block_until_ready(out_merge)
    jax.block_until_ready(out_feature)
    jax.block_until_ready(conv_out)

    assert out_merge.shape == (B, cfeat)
    assert out_feature.shape == (B, cfeat, hidden_dim // 3, 16)
    assert conv_out.shape == (B, hidden_dim, 16)

    # Tolerance-asserted pure-JAX reference (bf16 MXU path -> loose tolerance).
    ref_merge, (ref_feat, ref_conv) = encoder_forward_ref(x, params)
    np.testing.assert_allclose(np.asarray(conv_out), np.asarray(ref_conv),
                               rtol=5e-2, atol=5e-2)
    np.testing.assert_allclose(np.asarray(out_feature), np.asarray(ref_feat),
                               rtol=5e-2, atol=5e-2)
    np.testing.assert_allclose(np.asarray(out_merge), np.asarray(ref_merge),
                               rtol=5e-2, atol=5e-2)
    print("KERNEL_OK")
</pallas_src>

<mosaic_0001>
module attributes {stable_mosaic.version = 11 : i64} {
  func.func @_conv_bn_relu_kernel(%arg0: i32, %arg1: i32, %arg2: memref<1x16x32xbf16, #tpu.memory_space<vmem>>, %arg3: memref<16x16xbf16, #tpu.memory_space<vmem>>, %arg4: memref<16x1xf32, #tpu.memory_space<vmem>>, %arg5: memref<16x1xf32, #tpu.memory_space<vmem>>, %arg6: memref<1x16x32xbf16, #tpu.memory_space<vmem>>) attributes {dimension_semantics = [#tpu.dimension_semantics<parallel>, #tpu.dimension_semantics<parallel>], iteration_bounds = array<i64: 2, 1>, scalar_prefetch = 0 : i64, scratch_operands = 0 : i64, tpu.core_type = #tpu.core_type<tc>, window_params = [{transform_indices = @transform_0, window_bounds = array<i64: 1, 16, 32>}, {pipeline_mode = #tpu.pipeline_mode<synchronous>, transform_indices = @transform_1, window_bounds = array<i64: 16, 16>}, {pipeline_mode = #tpu.pipeline_mode<synchronous>, transform_indices = @transform_2, window_bounds = array<i64: 16, 1>}, {pipeline_mode = #tpu.pipeline_mode<synchronous>, transform_indices = @transform_3, window_bounds = array<i64: 16, 1>}, {transform_indices = @transform_4, window_bounds = array<i64: 1, 16, 32>}]} {
    %c0 = arith.constant 0 : index
    %c0_0 = arith.constant 0 : index
    %0 = vector.load %arg3[%c0, %c0_0] : memref<16x16xbf16, #tpu.memory_space<vmem>>, vector<16x16xbf16>
    %c0_1 = arith.constant 0 : index
    %c0_2 = arith.constant 0 : index
    %c0_3 = arith.constant 0 : index
    %1 = vector.load %arg2[%c0_1, %c0_2, %c0_3] : memref<1x16x32xbf16, #tpu.memory_space<vmem>>, vector<1x16x32xbf16>
    %2 = vector.shape_cast %1 : vector<1x16x32xbf16> to vector<16x32xbf16>
    %cst = arith.constant dense<0.000000e+00> : vector<16x32xf32>
    %3 = tpu.matmul %0, %2, %cst {dimension_numbers = #tpu.dot_dimension_numbers<[1], [0], [0], [1], [0, 0, 1, 1], [], []>} : vector<16x16xbf16>, vector<16x32xbf16>, vector<16x32xf32> -> vector<16x32xf32>
    %c0_4 = arith.constant 0 : index
    %c0_5 = arith.constant 0 : index
    %4 = vector.load %arg4[%c0_4, %c0_5] : memref<16x1xf32, #tpu.memory_space<vmem>>, vector<16x1xf32>
    %5 = vector.broadcast %4 : vector<16x1xf32> to vector<16x32xf32>
    %6 = arith.mulf %3, %5 : vector<16x32xf32>
    %c0_6 = arith.constant 0 : index
    %c0_7 = arith.constant 0 : index
    %7 = vector.load %arg5[%c0_6, %c0_7] : memref<16x1xf32, #tpu.memory_space<vmem>>, vector<16x1xf32>
    %8 = vector.broadcast %7 : vector<16x1xf32> to vector<16x32xf32>
    %9 = arith.addf %6, %8 : vector<16x32xf32>
    %cst_8 = arith.constant 0.000000e+00 : f32
    %10 = vector.broadcast %cst_8 : f32 to vector<16x32xf32>
    %11 = arith.maximumf %9, %10 : vector<16x32xf32>
    %12 = arith.truncf %11 : vector<16x32xf32> to vector<16x32xbf16>
    %c0_9 = arith.constant 0 : index
    %c0_10 = arith.constant 0 : index
    %c0_11 = arith.constant 0 : index
    %13 = vector.load %arg6[%c0_9, %c0_10, %c0_11] : memref<1x16x32xbf16, #tpu.memory_space<vmem>>, vector<1x16x32xbf16>
    %14 = vector.shape_cast %13 : vector<1x16x32xbf16> to vector<16x32xbf16>
    %15 = vector.shape_cast %12 : vector<16x32xbf16> to vector<1x16x32xbf16>
    tpu.vector_store %arg6[%c0_9, %c0_10, %c0_11], %15 {strides = array<i32>} : memref<1x16x32xbf16, #tpu.memory_space<vmem>>, vector<1x16x32xbf16>,
    return
  }
  func.func @transform_0(%arg0: i32, %arg1: i32) -> (i32, i32, i32) {
    %c0_i32 = arith.constant 0 : i32
    %c0_i32_0 = arith.constant 0 : i32
    return %arg0, %c0_i32, %arg1 : i32, i32, i32
  }
  func.func @transform_1(%arg0: i32, %arg1: i32) -> (i32, i32) {
    %c0_i32 = arith.constant 0 : i32
    %c0_i32_0 = arith.constant 0 : i32
    %c0_i32_1 = arith.constant 0 : i32
    return %c0_i32, %c0_i32_0 : i32, i32
  }
  func.func @transform_2(%arg0: i32, %arg1: i32) -> (i32, i32) {
    %c0_i32 = arith.constant 0 : i32
    %c0_i32_0 = arith.constant 0 : i32
    %c0_i32_1 = arith.constant 0 : i32
    return %c0_i32, %c0_i32_0 : i32, i32
  }
  func.func @transform_3(%arg0: i32, %arg1: i32) -> (i32, i32) {
    %c0_i32 = arith.constant 0 : i32
    %c0_i32_0 = arith.constant 0 : i32
    %c0_i32_1 = arith.constant 0 : i32
    return %c0_i32, %c0_i32_0 : i32, i32
  }
  func.func @transform_4(%arg0: i32, %arg1: i32) -> (i32, i32, i32) {
    %c0_i32 = arith.constant 0 : i32
    %c0_i32_0 = arith.constant 0 : i32
    return %arg0, %c0_i32, %arg1 : i32, i32, i32
  }
}

module attributes {stable_mosaic.version = 11 : i64} {
  func.func @_fe_pool_norm_kernel(%arg0: i32, %arg1: memref<1x12x16xf32, #tpu.memory_space<vmem>>, %arg2: memref<3x16x1xf32, #tpu.memory_space<vmem>>, %arg3: memref<16x1xf32, #tpu.memory_space<vmem>>, %arg4: memref<1x16x4x16xf32, #tpu.memory_space<vmem>>, %arg5: memref<1x16x1xf32, #tpu.memory_space<vmem>>) attributes {dimension_semantics = [#tpu.dimension_semantics<parallel>], iteration_bounds = array<i64: 2>, scalar_prefetch = 0 : i64, scratch_operands = 0 : i64, tpu.core_type = #tpu.core_type<tc>, window_params = [{transform_indices = @transform_0, window_bounds = array<i64: 1, 12, 16>}, {pipeline_mode = #tpu.pipeline_mode<synchronous>, transform_indices = @transform_1, window_bounds = array<i64: 3, 16, 1>}, {pipeline_mode = #tpu.pipeline_mode<synchronous>, transform_indices = @transform_2, window_bounds = array<i64: 16, 1>}, {transform_indices = @transform_3, window_bounds = array<i64: 1, 16, 4, 16>}, {transform_indices = @transform_4, window_bounds = array<i64: 1, 16, 1>}]} {
    %c0 = arith.constant 0 : index
    %c0_0 = arith.constant 0 : index
    %c0_1 = arith.constant 0 : index
    %0 = vector.load %arg1[%c0, %c0_0, %c0_1] : memref<1x12x16xf32, #tpu.memory_space<vmem>>, vector<1x12x16xf32>
    %1 = vector.shape_cast %0 : vector<1x12x16xf32> to vector<12x16xf32>
    %2 = arith.mulf %1, %1 : vector<12x16xf32>
    %cst = arith.constant dense<0.000000e+00> : vector<12xf32>
    %3 = vector.multi_reduction <add>, %2, %cst [1] : vector<12x16xf32> to vector<12xf32>
    %4 = vector.shape_cast %3 : vector<12xf32> to vector<12x1xf32>
    %cst_2 = arith.constant 1.000000e-24 : f32
    %5 = vector.broadcast %cst_2 : f32 to vector<12x1xf32>
    %6 = arith.maximumf %4, %5 : vector<12x1xf32>
    %7 = math.rsqrt %6 : vector<12x1xf32>
    %8 = vector.broadcast %7 : vector<12x1xf32> to vector<12x16xf32>
    %9 = arith.mulf %1, %8 : vector<12x16xf32>
    %c0_3 = arith.constant 0 : index
    %c0_4 = arith.constant 0 : index
    %10 = vector.load %arg3[%c0_3, %c0_4] : memref<16x1xf32, #tpu.memory_space<vmem>>, vector<16x1xf32>
    %11 = vector.shape_cast %10 : vector<16x1xf32> to vector<16x1x1xf32>
    %12 = vector.extract_strided_slice %9 {offsets = [0, 0], sizes = [4, 16], strides = [1, 1]} : vector<12x16xf32> to vector<4x16xf32>
    %c0_5 = arith.constant 0 : index
    %c0_6 = arith.constant 0 : index
    %c0_7 = arith.constant 0 : index
    %13 = vector.load %arg2[%c0_5, %c0_6, %c0_7] : memref<3x16x1xf32, #tpu.memory_space<vmem>>, vector<1x16x1xf32>
    %14 = vector.shape_cast %13 : vector<1x16x1xf32> to vector<16x1xf32>
    %15 = vector.shape_cast %14 : vector<16x1xf32> to vector<16x1x1xf32>
    %16 = vector.shape_cast %12 : vector<4x16xf32> to vector<1x4x16xf32>
    %17 = vector.broadcast %15 : vector<16x1x1xf32> to vector<16x4x16xf32>
    %18 = vector.broadcast %16 : vector<1x4x16xf32> to vector<16x4x16xf32>
    %19 = arith.mulf %17, %18 : vector<16x4x16xf32>
    %20 = vector.broadcast %11 : vector<16x1x1xf32> to vector<16x4x16xf32>
    %21 = arith.addf %20, %19 : vector<16x4x16xf32>
    %22 = vector.extract_strided_slice %9 {offsets = [4, 0], sizes = [4, 16], strides = [1, 1]} : vector<12x16xf32> to vector<4x16xf32>
    %c1 = arith.constant 1 : index
    %c0_8 = arith.constant 0 : index
    %c0_9 = arith.constant 0 : index
    %23 = vector.load %arg2[%c1, %c0_8, %c0_9] : memref<3x16x1xf32, #tpu.memory_space<vmem>>, vector<1x16x1xf32>
    %24 = vector.shape_cast %23 : vector<1x16x1xf32> to vector<16x1xf32>
    %25 = vector.shape_cast %24 : vector<16x1xf32> to vector<16x1x1xf32>
    %26 = vector.shape_cast %22 : vector<4x16xf32> to vector<1x4x16xf32>
    %27 = vector.broadcast %25 : vector<16x1x1xf32> to vector<16x4x16xf32>
    %28 = vector.broadcast %26 : vector<1x4x16xf32> to vector<16x4x16xf32>
    %29 = arith.mulf %27, %28 : vector<16x4x16xf32>
    %30 = arith.addf %21, %29 : vector<16x4x16xf32>
    %31 = vector.extract_strided_slice %9 {offsets = [8, 0], sizes = [4, 16], strides = [1, 1]} : vector<12x16xf32> to vector<4x16xf32>
    %c2 = arith.constant 2 : index
    %c0_10 = arith.constant 0 : index
    %c0_11 = arith.constant 0 : index
    %32 = vector.load %arg2[%c2, %c0_10, %c0_11] : memref<3x16x1xf32, #tpu.memory_space<vmem>>, vector<1x16x1xf32>
    %33 = vector.shape_cast %32 : vector<1x16x1xf32> to vector<16x1xf32>
    %34 = vector.shape_cast %33 : vector<16x1xf32> to vector<16x1x1xf32>
    %35 = vector.shape_cast %31 : vector<4x16xf32> to vector<1x4x16xf32>
    %36 = vector.broadcast %34 : vector<16x1x1xf32> to vector<16x4x16xf32>
    %37 = vector.broadcast %35 : vector<1x4x16xf32> to vector<16x4x16xf32>
    %38 = arith.mulf %36, %37 : vector<16x4x16xf32>
    %39 = arith.addf %30, %38 : vector<16x4x16xf32>
    %cst_12 = arith.constant 0.000000e+00 : f32
    %40 = vector.broadcast %cst_12 : f32 to vector<16x4x16xf32>
    %41 = arith.maximumf %39, %40 : vector<16x4x16xf32>
    %c0_13 = arith.constant 0 : index
    %c0_14 = arith.constant 0 : index
    %c0_15 = arith.constant 0 : index
    %c0_16 = arith.constant 0 : index
    %42 = vector.load %arg4[%c0_13, %c0_14, %c0_15, %c0_16] : memref<1x16x4x16xf32, #tpu.memory_space<vmem>>, vector<1x16x4x16xf32>
    %43 = vector.shape_cast %42 : vector<1x16x4x16xf32> to vector<16x4x16xf32>
    %44 = vector.shape_cast %41 : vector<16x4x16xf32> to vector<1x16x4x16xf32>
    tpu.vector_store %arg4[%c0_13, %c0_14, %c0_15, %c0_16], %44 {strides = array<i32>} : memref<1x16x4x16xf32, #tpu.memory_space<vmem>>, vector<1x16x4x16xf32>,
    %cst_17 = arith.constant dense<0xFF800000> : vector<16x4xf32>
    %45 = vector.multi_reduction <maximumf>, %41, %cst_17 [2] : vector<16x4x16xf32> to vector<16x4xf32>
    %cst_18 = arith.constant dense<0xFF800000> : vector<16xf32>
    %46 = vector.multi_reduction <maximumf>, %45, %cst_18 [1] : vector<16x4xf32> to vector<16xf32>
    %47 = vector.shape_cast %46 : vector<16xf32> to vector<16x1xf32>
    %cst_19 = arith.constant dense<0.000000e+00> : vector<16x4xf32>
    %48 = vector.multi_reduction <add>, %41, %cst_19 [2] : vector<16x4x16xf32> to vector<16x4xf32>
    %cst_20 = arith.constant dense<0.000000e+00> : vector<16xf32>
    %49 = vector.multi_reduction <add>, %48, %cst_20 [1] : vector<16x4xf32> to vector<16xf32>
    %50 = vector.shape_cast %49 : vector<16xf32> to vector<16x1xf32>
    %cst_21 = arith.constant 1.562500e-02 : f32
    %51 = vector.broadcast %cst_21 : f32 to vector<16x1xf32>
    %52 = arith.mulf %50, %51 : vector<16x1xf32>
    %53 = arith.addf %47, %52 : vector<16x1xf32>
    %54 = arith.mulf %53, %53 : vector<16x1xf32>
    %cst_22 = arith.constant dense<0.000000e+00> : vector<1xf32>
    %55 = vector.multi_reduction <add>, %54, %cst_22 [0] : vector<16x1xf32> to vector<1xf32>
    %56 = vector.shape_cast %55 : vector<1xf32> to vector<1x1xf32>
    %cst_23 = arith.constant 1.000000e-24 : f32
    %57 = vector.broadcast %cst_23 : f32 to vector<1x1xf32>
    %58 = arith.maximumf %56, %57 : vector<1x1xf32>
    %59 = math.rsqrt %58 : vector<1x1xf32>
    %60 = vector.broadcast %59 : vector<1x1xf32> to vector<16x1xf32>
    %61 = arith.mulf %53, %60 : vector<16x1xf32>
    %c0_24 = arith.constant 0 : index
    %c0_25 = arith.constant 0 : index
    %c0_26 = arith.constant 0 : index
    %62 = vector.load %arg5[%c0_24, %c0_25, %c0_26] : memref<1x16x1xf32, #tpu.memory_space<vmem>>, vector<1x16x1xf32>
    %63 = vector.shape_cast %62 : vector<1x16x1xf32> to vector<16x1xf32>
    %64 = vector.shape_cast %61 : vector<16x1xf32> to vector<1x16x1xf32>
    tpu.vector_store %arg5[%c0_24, %c0_25, %c0_26], %64 {strides = array<i32>} : memref<1x16x1xf32, #tpu.memory_space<vmem>>, vector<1x16x1xf32>,
    return
  }
  func.func @transform_0(%arg0: i32) -> (i32, i32, i32) {
    %c0_i32 = arith.constant 0 : i32
    %c0_i32_0 = arith.constant 0 : i32
    %c0_i32_1 = arith.constant 0 : i32
    return %arg0, %c0_i32, %c0_i32_0 : i32, i32, i32
  }
  func.func @transform_1(%arg0: i32) -> (i32, i32, i32) {
    %c0_i32 = arith.constant 0 : i32
    %c0_i32_0 = arith.constant 0 : i32
    %c0_i32_1 = arith.constant 0 : i32
    %c0_i32_2 = arith.constant 0 : i32
    return %c0_i32, %c0_i32_0, %c0_i32_1 : i32, i32, i32
  }
  func.func @transform_2(%arg0: i32) -> (i32, i32) {
    %c0_i32 = arith.constant 0 : i32
    %c0_i32_0 = arith.constant 0 : i32
    %c0_i32_1 = arith.constant 0 : i32
    return %c0_i32, %c0_i32_0 : i32, i32
  }
  func.func @transform_3(%arg0: i32) -> (i32, i32, i32, i32) {
    %c0_i32 = arith.constant 0 : i32
    %c0_i32_0 = arith.constant 0 : i32
    %c0_i32_1 = arith.constant 0 : i32
    %c0_i32_2 = arith.constant 0 : i32
    return %arg0, %c0_i32, %c0_i32_0, %c0_i32_1 : i32, i32, i32, i32
  }
  func.func @transform_4(%arg0: i32) -> (i32, i32, i32) {
    %c0_i32 = arith.constant 0 : i32
    %c0_i32_0 = arith.constant 0 : i32
    %c0_i32_1 = arith.constant 0 : i32
    return %arg0, %c0_i32, %c0_i32_0 : i32, i32, i32
  }
}

module attributes {stable_mosaic.version = 11 : i64} {
  func.func @_conv_bn_relu_kernel(%arg0: i32, %arg1: i32, %arg2: memref<1x48x16xbf16, #tpu.memory_space<vmem>>, %arg3: memref<16x48xbf16, #tpu.memory_space<vmem>>, %arg4: memref<16x1xf32, #tpu.memory_space<vmem>>, %arg5: memref<16x1xf32, #tpu.memory_space<vmem>>, %arg6: memref<1x16x16xf32, #tpu.memory_space<vmem>>) attributes {dimension_semantics = [#tpu.dimension_semantics<parallel>, #tpu.dimension_semantics<parallel>], iteration_bounds = array<i64: 2, 1>, scalar_prefetch = 0 : i64, scratch_operands = 0 : i64, tpu.core_type = #tpu.core_type<tc>, window_params = [{transform_indices = @transform_0, window_bounds = array<i64: 1, 48, 16>}, {pipeline_mode = #tpu.pipeline_mode<synchronous>, transform_indices = @transform_1, window_bounds = array<i64: 16, 48>}, {pipeline_mode = #tpu.pipeline_mode<synchronous>, transform_indices = @transform_2, window_bounds = array<i64: 16, 1>}, {pipeline_mode = #tpu.pipeline_mode<synchronous>, transform_indices = @transform_3, window_bounds = array<i64: 16, 1>}, {transform_indices = @transform_4, window_bounds = array<i64: 1, 16, 16>}]} {
    %c0 = arith.constant 0 : index
    %c0_0 = arith.constant 0 : index
    %0 = vector.load %arg3[%c0, %c0_0] : memref<16x48xbf16, #tpu.memory_space<vmem>>, vector<16x48xbf16>
    %c0_1 = arith.constant 0 : index
    %c0_2 = arith.constant 0 : index
    %c0_3 = arith.constant 0 : index
    %1 = vector.load %arg2[%c0_1, %c0_2, %c0_3] : memref<1x48x16xbf16, #tpu.memory_space<vmem>>, vector<1x48x16xbf16>
    %2 = vector.shape_cast %1 : vector<1x48x16xbf16> to vector<48x16xbf16>
    %cst = arith.constant dense<0.000000e+00> : vector<16x16xf32>
    %3 = tpu.matmul %0, %2, %cst {dimension_numbers = #tpu.dot_dimension_numbers<[1], [0], [0], [1], [0, 0, 1, 1], [], []>} : vector<16x48xbf16>, vector<48x16xbf16>, vector<16x16xf32> -> vector<16x16xf32>
    %c0_4 = arith.constant 0 : index
    %c0_5 = arith.constant 0 : index
    %4 = vector.load %arg4[%c0_4, %c0_5] : memref<16x1xf32, #tpu.memory_space<vmem>>, vector<16x1xf32>
    %5 = vector.broadcast %4 : vector<16x1xf32> to vector<16x16xf32>
    %6 = arith.mulf %3, %5 : vector<16x16xf32>
    %c0_6 = arith.constant 0 : index
    %c0_7 = arith.constant 0 : index
    %7 = vector.load %arg5[%c0_6, %c0_7] : memref<16x1xf32, #tpu.memory_space<vmem>>, vector<16x1xf32>
    %8 = vector.broadcast %7 : vector<16x1xf32> to vector<16x16xf32>
    %9 = arith.addf %6, %8 : vector<16x16xf32>
    %cst_8 = arith.constant 0.000000e+00 : f32
    %10 = vector.broadcast %cst_8 : f32 to vector<16x16xf32>
    %11 = arith.maximumf %9, %10 : vector<16x16xf32>
    %c0_9 = arith.constant 0 : index
    %c0_10 = arith.constant 0 : index
    %c0_11 = arith.constant 0 : index
    %12 = vector.load %arg6[%c0_9, %c0_10, %c0_11] : memref<1x16x16xf32, #tpu.memory_space<vmem>>, vector<1x16x16xf32>
    %13 = vector.shape_cast %12 : vector<1x16x16xf32> to vector<16x16xf32>
    %14 = vector.shape_cast %11 : vector<16x16xf32> to vector<1x16x16xf32>
    tpu.vector_store %arg6[%c0_9, %c0_10, %c0_11], %14 {strides = array<i32>} : memref<1x16x16xf32, #tpu.memory_space<vmem>>, vector<1x16x16xf32>,
    return
  }
  func.func @transform_0(%arg0: i32, %arg1: i32) -> (i32, i32, i32) {
    %c0_i32 = arith.constant 0 : i32
    %c0_i32_0 = arith.constant 0 : i32
    return %arg0, %c0_i32, %arg1 : i32, i32, i32
  }
  func.func @transform_1(%arg0: i32, %arg1: i32) -> (i32, i32) {
    %c0_i32 = arith.constant 0 : i32
    %c0_i32_0 = arith.constant 0 : i32
    %c0_i32_1 = arith.constant 0 : i32
    return %c0_i32, %c0_i32_0 : i32, i32
  }
  func.func @transform_2(%arg0: i32, %arg1: i32) -> (i32, i32) {
    %c0_i32 = arith.constant 0 : i32
    %c0_i32_0 = arith.constant 0 : i32
    %c0_i32_1 = arith.constant 0 : i32
    return %c0_i32, %c0_i32_0 : i32, i32
  }
  func.func @transform_3(%arg0: i32, %arg1: i32) -> (i32, i32) {
    %c0_i32 = arith.constant 0 : i32
    %c0_i32_0 = arith.constant 0 : i32
    %c0_i32_1 = arith.constant 0 : i32
    return %c0_i32, %c0_i32_0 : i32, i32
  }
  func.func @transform_4(%arg0: i32, %arg1: i32) -> (i32, i32, i32) {
    %c0_i32 = arith.constant 0 : i32
    %c0_i32_0 = arith.constant 0 : i32
    return %arg0, %c0_i32, %arg1 : i32, i32, i32
  }
}

</mosaic_0001>

<llo_original>
// kernel: _lambda_.3
$region0: #{_lambda_.3}
  #allocation0 [shape = 'u32[]', space=smem, size = 0x4, offset = 0x4, fixed_abs, tag = 'smem constant byte address 0x4 - core index']
  #allocation1 [shape = 'u32[144,128]{1,0:T(1,128)}', space=vmem, size = 0x12000, scoped, tag = 'internal scratch']
  %s0 = inlined_call_operand.vmem [shape: bf16[2,16,32], index: 0, kind: input, shape index: {}]
  %s1 = inlined_call_operand.vmem [shape: bf16[16,16], index: 1, kind: input, shape index: {}]
  %s2 = inlined_call_operand.vmem [shape: f32[16,1], index: 2, kind: input, shape index: {}]
  %s3 = inlined_call_operand.vmem [shape: f32[16,1], index: 3, kind: input, shape index: {}]
  %s4 = inlined_call_operand.vmem [shape: bf16[2,16,32], index: 4, kind: output, shape index: {}]
  %s5 = sld [smem:[#allocation0]]
  $region49: #{_lambda_.3} parent=0
    _
  %s7 = ssub.s32 1, %s5
  %s8 = scalar_select 0, %s7, %s5
  loop: start=0, step=1, limit=4
  $region2: #{_lambda_.3} parent=0 // loop_pre_header
    _
  $region3: #{_lambda_.3} parent=0 // loop_header
    %s10 = sphi 0, %s14
    %p11 = scmp.ge.s32.totalorder %s10, 4
    %s17 = sphi 0, %s29
    %s18 = sphi 0, %s25
    %s19 = sphi 0, %s17
    %s20 = sphi 0, %s18
    %s21 = sphi 0, %s19
    %s22 = sphi 0, %s20
    %s34 = sphi 0, %s36
    %s37 = sphi 0, %s34
    %s38 = sphi 0, %s37
    %s54 = sphi 0, %s38
    %s58 = sphi 0, %s58
    %s60 = sphi 0, %s58
    %s61 = sphi 0, %s60
    %s75 = sphi 0, %s61
    %s79 = sphi 0, %s79
    %s81 = sphi 0, %s79
    %s82 = sphi 0, %s81
    %s96 = sphi 0, %s82
    %s100 = sphi 0, %s100
    %s102 = sphi 0, %s100
    %s103 = sphi 0, %s102
    %s117 = sphi 0, %s103
    %s125 = sphi 0, %s127
    %s128 = sphi 0, %s125
    %s129 = sphi 0, %s128
    %s145 = sphi 0, %s129
  $region4: #{_lambda_.3} parent=0 // loop_header_branch
    %13 = sbr.rel (%p11) target = $region8
  $region5: #{_lambda_.3} parent=0 // loop_body
    %s15 = ssub.s32 %s10, 1
    %s16 = ssub.s32 %s10, 2
    %s23 = sadd.s32 1, %s18
    %p24 = scmp.ge.s32.totalorder %s23, 1
    %s25 = scalar_select %p24, 0, %s23
    %s26 = sadd.s32 1, %s17
    %s27 = scalar_select %p24, %s26, %s17
    %p28 = scmp.ge.s32.totalorder %s27, 2
    %s29 = scalar_select %p28, 0, %s27
    %s30 = ssub.s32 %s17, %s29
    %s31 = ssub.s32 %s18, %s25
    %s32 = sor.u32 %s30, %s31
    %p33 = scmp.eq.s32.totalorder %s32, 0
    %s35 = sadd.s32 %s34, 1
    %s36 = scalar_select %p33, %s34, %s35
    %p39 = pneg %p33
    %p40 = scmp.eq.s32.totalorder %s10, 1
    %p41 = por %p39, %p40
    %p42 = scmp.ne.s32.totalorder %s34, %s37
    %p43 = scmp.eq.s32.totalorder %s10, 0
    %p44 = por %p42, %p43
    %p45 = scmp.ne.s32.totalorder %s34, %s37
    %p46 = scmp.eq.s32.totalorder %s15, 1
    %p47 = por %p45, %p46
    %p48 = scmp.ne.s32.totalorder %s37, %s38
    %p49 = scmp.eq.s32.totalorder %s15, 0
    %p50 = por %p48, %p49
    %p51 = scmp.ne.s32.totalorder %s37, %s38
    %p52 = scmp.eq.s32.totalorder %s16, 1
    %p53 = por %p51, %p52
    %p55 = scmp.ne.s32.totalorder %s38, %s54
    %p56 = scmp.eq.s32.totalorder %s16, 0
    %p57 = por %p55, %p56
    %s59 = sadd.s32 %s58, 1
    %p62 = scmp.eq.s32.totalorder %s10, 1
    %p63 = scmp.ne.s32.totalorder %s58, %s60
    %p64 = scmp.eq.s32.totalorder %s10, 0
    %p65 = por %p63, %p64
    %p66 = scmp.ne.s32.totalorder %s58, %s60
    %p67 = scmp.eq.s32.totalorder %s15, 1
    %p68 = por %p66, %p67
    %p69 = scmp.ne.s32.totalorder %s60, %s61
    %p70 = scmp.eq.s32.totalorder %s15, 0
    %p71 = por %p69, %p70
    %p72 = scmp.ne.s32.totalorder %s60, %s61
    %p73 = scmp.eq.s32.totalorder %s16, 1
    %p74 = por %p72, %p73
    %p76 = scmp.ne.s32.totalorder %s61, %s75
    %p77 = scmp.eq.s32.totalorder %s16, 0
    %p78 = por %p76, %p77
    %s80 = sadd.s32 %s79, 1
    %p83 = scmp.eq.s32.totalorder %s10, 1
    %p84 = scmp.ne.s32.totalorder %s79, %s81
    %p85 = scmp.eq.s32.totalorder %s10, 0
    %p86 = por %p84, %p85
    %p87 = scmp.ne.s32.totalorder %s79, %s81
    %p88 = scmp.eq.s32.totalorder %s15, 1
    %p89 = por %p87, %p88
    %p90 = scmp.ne.s32.totalorder %s81, %s82
    %p91 = scmp.eq.s32.totalorder %s15, 0
    %p92 = por %p90, %p91
    %p93 = scmp.ne.s32.totalorder %s81, %s82
    %p94 = scmp.eq.s32.totalorder %s16, 1
    %p95 = por %p93, %p94
    %p97 = scmp.ne.s32.totalorder %s82, %s96
    %p98 = scmp.eq.s32.totalorder %s16, 0
    %p99 = por %p97, %p98
    %s101 = sadd.s32 %s100, 1
    %p104 = scmp.eq.s32.totalorder %s10, 1
    %p105 = scmp.ne.s32.totalorder %s100, %s102
    %p106 = scmp.eq.s32.totalorder %s10, 0
    %p107 = por %p105, %p106
    %p108 = scmp.ne.s32.totalorder %s100, %s102
    %p109 = scmp.eq.s32.totalorder %s15, 1
    %p110 = por %p108, %p109
    %p111 = scmp.ne.s32.totalorder %s102, %s103
    %p112 = scmp.eq.s32.totalorder %s15, 0
    %p113 = por %p111, %p112
    %p114 = scmp.ne.s32.totalorder %s102, %s103
    %p115 = scmp.eq.s32.totalorder %s16, 1
    %p116 = por %p114, %p115
    %p118 = scmp.ne.s32.totalorder %s103, %s117
    %p119 = scmp.eq.s32.totalorder %s16, 0
    %p120 = por %p118, %p119
    %s121 = ssub.s32 %s17, %s29
    %s122 = ssub.s32 %s18, %s25
    %s123 = sor.u32 %s121, %s122
    %p124 = scmp.eq.s32.totalorder %s123, 0
    %s126 = sadd.s32 %s125, 1
    %s127 = scalar_select %p124, %s125, %s126
    %p130 = pneg %p124
    %p131 = scmp.eq.s32.totalorder %s10, 1
    %p132 = por %p130, %p131
    %p133 = scmp.ne.s32.totalorder %s125, %s128
    %p134 = scmp.eq.s32.totalorder %s10, 0
    %p135 = por %p133, %p134
    %p136 = scmp.ne.s32.totalorder %s125, %s128
    %p137 = scmp.eq.s32.totalorder %s15, 1
    %p138 = por %p136, %p137
    %p139 = scmp.ne.s32.totalorder %s128, %s129
    %p140 = scmp.eq.s32.totalorder %s15, 0
    %p141 = por %p139, %p140
    %p142 = scmp.ne.s32.totalorder %s128, %s129
    %p143 = scmp.eq.s32.totalorder %s16, 1
    %p144 = por %p142, %p143
    %p146 = scmp.ne.s32.totalorder %s129, %s145
    %p147 = scmp.eq.s32.totalorder %s16, 0
    %p148 = por %p146, %p147
    %p149 = scmp.le.s32.totalorder 1, %s10
    %p150 = scmp.lt.s32.totalorder %s10, 3
    %p151 = pnand %p149, %p150
    %p152 = pneg %p151
    // Predicated region
    $region9: #{_lambda_.3} parent=5 // pred_check
      _
    $region10: #{_lambda_.3} parent=5 // pred_check_branch
      %154 = sbr.rel (%p151) target = $region12
    $region11: #{_lambda_.3} parent=5 // pred_region
      %s155 = ssub.s32 %s10, 1
      // Predicated region
      $region13: #{_lambda_.3} parent=11 // pred_check
        %p156 = pneg %p71
      $region14: #{_lambda_.3} parent=11 // pred_check_branch
        %158 = sbr.rel (%p156) target = $region16
      $region15: #{_lambda_.3} parent=11 // pred_region
        _
      $region16: #{_lambda_.3} parent=11 // pred_fallthru
        _
      // Predicated region
      $region17: #{_lambda_.3} parent=11 // pred_check
        %p159 = pneg %p92
      $region18: #{_lambda_.3} parent=11 // pred_check_branch
        %161 = sbr.rel (%p159) target = $region20
      $region19: #{_lambda_.3} parent=11 // pred_region
        _
      $region20: #{_lambda_.3} parent=11 // pred_fallthru
        _
      // Predicated region
      $region21: #{_lambda_.3} parent=11 // pred_check
        %p162 = pneg %p113
      $region22: #{_lambda_.3} parent=11 // pred_check_branch
        %164 = sbr.rel (%p162) target = $region24
      $region23: #{_lambda_.3} parent=11 // pred_region
        _
      $region24: #{_lambda_.3} parent=11 // pred_fallthru
        _
    $region12: #{_lambda_.3} parent=5 // pred_fallthru
      _
    %p165 = scmp.lt.s32.totalorder %s10, 2
    // Predicated region
    $region25: #{_lambda_.3} parent=5 // pred_check
      %p166 = pneg %p165
    $region26: #{_lambda_.3} parent=5 // pred_check_branch
      %168 = sbr.rel (%p166) target = $region28
    $region27: #{_lambda_.3} parent=5 // pred_region
      // Predicated region
      $region29: #{_lambda_.3} parent=27 // pred_check
        %p169 = pneg %p44
      $region30: #{_lambda_.3} parent=27 // pred_check_branch
        %171 = sbr.rel (%p169) target = $region32
      $region31: #{_lambda_.3} parent=27 // pred_region
        %p172 = scmp.lt.s32.totalorder %s17, 1
        %s173 = scalar_select %p172, %s17, 1
        %p174 = scmp.lt.s32.totalorder %s18, 0
        %s175 = scalar_select %p174, %s18, 0
        %s176 = smul.addr %s173, 2
        %s177 = sadd.s32 %s175, %s176
        %s178 = smul.addr %s177, 4
        %s179 = scalar_lea.vmem %s0, %s178
      $region32: #{_lambda_.3} parent=27 // pred_fallthru
        _
    $region28: #{_lambda_.3} parent=5 // pred_fallthru
      _
    %p180 = scmp.le.s32.totalorder 1, %s10
    %p181 = scmp.lt.s32.totalorder %s10, 3
    %p182 = pnand %p180, %p181
    %p183 = pneg %p182
    // Predicated region
    $region33: #{_lambda_.3} parent=5 // pred_check
      _
    $region34: #{_lambda_.3} parent=5 // pred_check_branch
      %185 = sbr.rel (%p182) target = $region36
    $region35: #{_lambda_.3} parent=5 // pred_region
      %s186 = ssub.s32 %s10, 1
      %p187 = scmp.lt.s32.totalorder %s19, 1
      %s188 = scalar_select %p187, %s19, 1
      %p189 = scmp.lt.s32.totalorder %s20, 0
      %s190 = scalar_select %p189, %s20, 0
      %s191 = smul.addr %s188, 2
      %s192 = sadd.s32 %s190, %s191
      %s193 = smul.addr %s192, 4
      %s194 = scalar_lea.vmem %s0, %s193
      %p195 = pneg %p50
      %p196 = pneg %p47
      %p197 = pneg %p71
      %p198 = pneg %p68
      %p199 = pneg %p92
      %p200 = pneg %p89
      %p201 = pneg %p113
      %p202 = pneg %p110
      %p203 = pneg %p141
      %p204 = pneg %p138
      %p205 = scmp.lt.s32.totalorder %s19, 1
      %s206 = scalar_select %p205, %s19, 1
      %p207 = scmp.lt.s32.totalorder %s20, 0
      %s208 = scalar_select %p207, %s20, 0
      %s209 = smul.addr %s206, 2
      %s210 = sadd.s32 %s208, %s209
      %s211 = smul.addr %s210, 4
      %s212 = scalar_lea.vmem %s4, %s211
      %p213 = scmp.lt.s32.totalorder %s19, 1
      %s214 = scalar_select %p213, %s19, 1
      %p215 = scmp.lt.s32.totalorder %s20, 0
      %s216 = scalar_select %p215, %s20, 0
      %s217 = smul.addr %s214, 2
      %s218 = sadd.s32 %s216, %s217
      %s219 = smul.addr %s218, 4
      %s220 = scalar_lea.vmem %s0, %s219
      %p221 = scmp.lt.s32.totalorder %s19, 1
      %s222 = scalar_select %p221, %s19, 1
      %p223 = scmp.lt.s32.totalorder %s20, 0
      %s224 = scalar_select %p223, %s20, 0
      %s225 = smul.addr %s222, 2
      %s226 = sadd.s32 %s224, %s225
      %s227 = smul.addr %s226, 4
      %s228 = scalar_lea.vmem %s4, %s227
      %v230 = vld [vmem:[%s1] sm:$0xf]
      %v231 = vld [vmem:[%s1 + $0x4] sm:$0xf]
      %v232 = vld [vmem:[%s220] sm:$0xf]
      %v233 = vld [vmem:[%s220 + $0x4] sm:$0xf]
      %v236 = vunpack.c.l.b16 %v230
      %v237 = vunpack.c.l.b16 %v231
      %v238 = vpack.c.b16 %v237, %v236
      %v241 = vunpack.c.l.b16 %v232
      %v242 = vunpack.c.l.b16 %v233
      %v243 = vpack.c.b16 %v242, %v241
      %vm245 = vcmask 130048
      %v247 = vsel %vm245, %v238, 0
      %249 = vmatprep.subr.bf16.mxu0 0
      %250 = vmatpush1.bf16.msra.mxu0 %v243
      %251 = vmatprep.subr.bf16.mxu0 0
      %252 = vmatpush1.bf16.msra.mxu0 0
      %253 = vmatprep.subr.bf16.mxu0 0
      %254 = vmatpush1.bf16.msra.mxu0 0
      %255 = vmatprep.subr.bf16.mxu0 0
      %256 = vmatpush1.bf16.msra.mxu0 0
      %257 = vmatprep.subr.bf16.mxu0 0
      %258 = vmatpush1.bf16.msra.mxu0 0
      %259 = vmatprep.subr.bf16.mxu0 0
      %260 = vmatpush1.bf16.msra.mxu0 0
      %261 = vmatprep.subr.bf16.mxu0 0
      %262 = vmatpush1.bf16.msra.mxu0 0
      %263 = vmatprep.subr.bf16.mxu0 0
      %264 = vmatpush1.bf16.msra.mxu0 0
      %265 = vmatprep.subr.bf16.mxu0 0
      %266 = vmatpush1.bf16.msra.mxu0 0
      %267 = vmatprep.subr.bf16.mxu0 0
      %268 = vmatpush1.bf16.msra.mxu0 0
      %269 = vmatprep.subr.bf16.mxu0 0
      %270 = vmatpush1.bf16.msra.mxu0 0
      %271 = vmatprep.subr.bf16.mxu0 0
      %272 = vmatpush1.bf16.msra.mxu0 0
      %273 = vmatprep.subr.bf16.mxu0 0
      %274 = vmatpush1.bf16.msra.mxu0 0
      %275 = vmatprep.subr.bf16.mxu0 0
      %276 = vmatpush1.bf16.msra.mxu0 0
      %277 = vmatprep.subr.bf16.mxu0 0
      %278 = vmatpush1.bf16.msra.mxu0 0
      %279 = vmatprep.subr.bf16.mxu0 0
      %280 = vmatpush1.bf16.msra.mxu0 0
      %281 = vmatprep.mubr.bf16.mxu0 0
      %282 = vmatmul.mubr.bf16.gmra.mrb[0].mxu0 %v247
      %v283 = vpop.f32.mrb[0].mxu0
      %v284 = vadd.f32 0.0, %v283
      %v285 = vpop.f32.mrb[0].mxu0
      %v286 = vpop.f32.mrb[0].mxu0
      %v287 = vadd.f32 0.0, %v286
      %v288 = vpop.f32.mrb[0].mxu0
      %289 = vdwg.mxu0
      %v290 = vld [vmem:[%s2] sm:$0xff]
      %v291 = vld [vmem:[%s2 + $0x8] sm:$0xff]
      %293 = vset.pattern.permute.xlu0 0
      %294 = vperm.xlu0 %293, %v290
      %v295 = vpop.permute.xlu0 %294
      %298 = vset.pattern.permute.xlu0 0
      %299 = vperm.xlu0 %298, %v291
      %v300 = vpop.permute.xlu0 %299
      %v302 = vmul.f32 %v284, %v295
      %v303 = vmul.f32 %v287, %v300
      %v304 = vld [vmem:[%s3] sm:$0xff]
      %v305 = vld [vmem:[%s3 + $0x8] sm:$0xff]
      %307 = vset.pattern.permute.xlu0 0
      %308 = vperm.xlu0 %307, %v304
      %v309 = vpop.permute.xlu0 %308
      %312 = vset.pattern.permute.xlu0 0
      %313 = vperm.xlu0 %312, %v305
      %v314 = vpop.permute.xlu0 %313
      %v316 = vadd.f32 %v302, %v309
      %v317 = vadd.f32 %v303, %v314
      %v318 = vmax.f32 %v316, 0.0
      %v319 = vmax.f32 %v317, 0.0
      %v320 = vpack.c.bf16 %v319, %v318
      %v322 = vunpack.c.l.b16 %v320
      %v323 = vunpack.c.h.b16 %v320
      %v324 = vpack.c.b16 %v322, %v322
      %v325 = vpack.c.b16 %v323, %v323
      %vm328 = vcmask 257024
      %329 = vst.msk [vmem:[%s228] sm:$0xf] %vm328, %v324
      %330 = vst.msk [vmem:[%s228 + $0x4] sm:$0xf] %vm328, %v325
      %p331 = scmp.lt.s32.totalorder %s19, 1
      %s332 = scalar_select %p331, %s19, 1
      %p333 = scmp.lt.s32.totalorder %s20, 0
      %s334 = scalar_select %p333, %s20, 0
      %s335 = smul.addr %s332, 2
      %s336 = sadd.s32 %s334, %s335
      %s337 = smul.addr %s336, 4
      %s338 = scalar_lea.vmem %s4, %s337
      // Predicated region
      $region37: #{_lambda_.3} parent=35 // pred_check
        %p339 = pneg %p138
      $region38: #{_lambda_.3} parent=35 // pred_check_branch
        %341 = sbr.rel (%p339) target = $region40
      $region39: #{_lambda_.3} parent=35 // pred_region
        _
      $region40: #{_lambda_.3} parent=35 // pred_fallthru
        _
    $region36: #{_lambda_.3} parent=5 // pred_fallthru
      _
    %p342 = scmp.le.s32.totalorder 2, %s10
    // Predicated region
    $region41: #{_lambda_.3} parent=5 // pred_check
      %p343 = pneg %p342
    $region42: #{_lambda_.3} parent=5 // pred_check_branch
      %345 = sbr.rel (%p343) target = $region44
    $region43: #{_lambda_.3} parent=5 // pred_region
      %s346 = ssub.s32 %s10, 2
      // Predicated region
      $region45: #{_lambda_.3} parent=43 // pred_check
        %p347 = pneg %p144
      $region46: #{_lambda_.3} parent=43 // pred_check_branch
        %349 = sbr.rel (%p347) target = $region48
      $region47: #{_lambda_.3} parent=43 // pred_region
        %p350 = scmp.lt.s32.totalorder %s21, 1
        %s351 = scalar_select %p350, %s21, 1
        %p352 = scmp.lt.s32.totalorder %s22, 0
        %s353 = scalar_select %p352, %s22, 0
        %s354 = smul.addr %s351, 2
        %s355 = sadd.s32 %s353, %s354
        %s356 = smul.addr %s355, 4
        %s357 = scalar_lea.vmem %s4, %s356
      $region48: #{_lambda_.3} parent=43 // pred_fallthru
        _
    $region44: #{_lambda_.3} parent=5 // pred_fallthru
      _
  $region6: #{_lambda_.3} parent=0 // loop_footer
    %s14 = sadd.s32 1, %s10
  $region7: #{_lambda_.3} parent=0 // loop_footer_branch
    %9 = sbr.rel target = $region3
  $region8: #{_lambda_.3} parent=0 // loop_exit
    _

// kernel: _lambda_.4
$region0: #{_lambda_.4}
  #allocation0 [shape = 'u32[]', space=smem, size = 0x4, offset = 0x4, fixed_abs, tag = 'smem constant byte address 0x4 - core index']
  #allocation1 [shape = 'u32[144,128]{1,0:T(1,128)}', space=vmem, size = 0x12000, scoped, tag = 'internal scratch']
  %s0 = inlined_call_operand.vmem [shape: bf16[2,48,16], index: 0, kind: input, shape index: {}]
  %s1 = inlined_call_operand.vmem [shape: bf16[16,48], index: 1, kind: input, shape index: {}]
  %s2 = inlined_call_operand.vmem [shape: f32[16,1], index: 2, kind: input, shape index: {}]
  %s3 = inlined_call_operand.vmem [shape: f32[16,1], index: 3, kind: input, shape index: {}]
  %s4 = inlined_call_operand.vmem [shape: f32[2,16,16], index: 4, kind: output, shape index: {}]
  %s5 = sld [smem:[#allocation0]]
  $region49: #{_lambda_.4} parent=0
    _
  %s7 = ssub.s32 1, %s5
  %s8 = scalar_select 0, %s7, %s5
  loop: start=0, step=1, limit=4
  $region2: #{_lambda_.4} parent=0 // loop_pre_header
    _
  $region3: #{_lambda_.4} parent=0 // loop_header
    %s10 = sphi 0, %s14
    %p11 = scmp.ge.s32.totalorder %s10, 4
    %s17 = sphi 0, %s29
    %s18 = sphi 0, %s25
    %s19 = sphi 0, %s17
    %s20 = sphi 0, %s18
    %s21 = sphi 0, %s19
    %s22 = sphi 0, %s20
    %s34 = sphi 0, %s36
    %s37 = sphi 0, %s34
    %s38 = sphi 0, %s37
    %s54 = sphi 0, %s38
    %s58 = sphi 0, %s58
    %s60 = sphi 0, %s58
    %s61 = sphi 0, %s60
    %s75 = sphi 0, %s61
    %s79 = sphi 0, %s79
    %s81 = sphi 0, %s79
    %s82 = sphi 0, %s81
    %s96 = sphi 0, %s82
    %s100 = sphi 0, %s100
    %s102 = sphi 0, %s100
    %s103 = sphi 0, %s102
    %s117 = sphi 0, %s103
    %s125 = sphi 0, %s127
    %s128 = sphi 0, %s125
    %s129 = sphi 0, %s128
    %s145 = sphi 0, %s129
  $region4: #{_lambda_.4} parent=0 // loop_header_branch
    %13 = sbr.rel (%p11) target = $region8
  $region5: #{_lambda_.4} parent=0 // loop_body
    %s15 = ssub.s32 %s10, 1
    %s16 = ssub.s32 %s10, 2
    %s23 = sadd.s32 1, %s18
    %p24 = scmp.ge.s32.totalorder %s23, 1
    %s25 = scalar_select %p24, 0, %s23
    %s26 = sadd.s32 1, %s17
    %s27 = scalar_select %p24, %s26, %s17
    %p28 = scmp.ge.s32.totalorder %s27, 2
    %s29 = scalar_select %p28, 0, %s27
    %s30 = ssub.s32 %s17, %s29
    %s31 = ssub.s32 %s18, %s25
    %s32 = sor.u32 %s30, %s31
    %p33 = scmp.eq.s32.totalorder %s32, 0
    %s35 = sadd.s32 %s34, 1
    %s36 = scalar_select %p33, %s34, %s35
    %p39 = pneg %p33
    %p40 = scmp.eq.s32.totalorder %s10, 1
    %p41 = por %p39, %p40
    %p42 = scmp.ne.s32.totalorder %s34, %s37
    %p43 = scmp.eq.s32.totalorder %s10, 0
    %p44 = por %p42, %p43
    %p45 = scmp.ne.s32.totalorder %s34, %s37
    %p46 = scmp.eq.s32.totalorder %s15, 1
    %p47 = por %p45, %p46
    %p48 = scmp.ne.s32.totalorder %s37, %s38
    %p49 = scmp.eq.s32.totalorder %s15, 0
    %p50 = por %p48, %p49
    %p51 = scmp.ne.s32.totalorder %s37, %s38
    %p52 = scmp.eq.s32.totalorder %s16, 1
    %p53 = por %p51, %p52
    %p55 = scmp.ne.s32.totalorder %s38, %s54
    %p56 = scmp.eq.s32.totalorder %s16, 0
    %p57 = por %p55, %p56
    %s59 = sadd.s32 %s58, 1
    %p62 = scmp.eq.s32.totalorder %s10, 1
    %p63 = scmp.ne.s32.totalorder %s58, %s60
    %p64 = scmp.eq.s32.totalorder %s10, 0
    %p65 = por %p63, %p64
    %p66 = scmp.ne.s32.totalorder %s58, %s60
    %p67 = scmp.eq.s32.totalorder %s15, 1
    %p68 = por %p66, %p67
    %p69 = scmp.ne.s32.totalorder %s60, %s61
    %p70 = scmp.eq.s32.totalorder %s15, 0
    %p71 = por %p69, %p70
    %p72 = scmp.ne.s32.totalorder %s60, %s61
    %p73 = scmp.eq.s32.totalorder %s16, 1
    %p74 = por %p72, %p73
    %p76 = scmp.ne.s32.totalorder %s61, %s75
    %p77 = scmp.eq.s32.totalorder %s16, 0
    %p78 = por %p76, %p77
    %s80 = sadd.s32 %s79, 1
    %p83 = scmp.eq.s32.totalorder %s10, 1
    %p84 = scmp.ne.s32.totalorder %s79, %s81
    %p85 = scmp.eq.s32.totalorder %s10, 0
    %p86 = por %p84, %p85
    %p87 = scmp.ne.s32.totalorder %s79, %s81
    %p88 = scmp.eq.s32.totalorder %s15, 1
    %p89 = por %p87, %p88
    %p90 = scmp.ne.s32.totalorder %s81, %s82
    %p91 = scmp.eq.s32.totalorder %s15, 0
    %p92 = por %p90, %p91
    %p93 = scmp.ne.s32.totalorder %s81, %s82
    %p94 = scmp.eq.s32.totalorder %s16, 1
    %p95 = por %p93, %p94
    %p97 = scmp.ne.s32.totalorder %s82, %s96
    %p98 = scmp.eq.s32.totalorder %s16, 0
    %p99 = por %p97, %p98
    %s101 = sadd.s32 %s100, 1
    %p104 = scmp.eq.s32.totalorder %s10, 1
    %p105 = scmp.ne.s32.totalorder %s100, %s102
    %p106 = scmp.eq.s32.totalorder %s10, 0
    %p107 = por %p105, %p106
    %p108 = scmp.ne.s32.totalorder %s100, %s102
    %p109 = scmp.eq.s32.totalorder %s15, 1
    %p110 = por %p108, %p109
    %p111 = scmp.ne.s32.totalorder %s102, %s103
    %p112 = scmp.eq.s32.totalorder %s15, 0
    %p113 = por %p111, %p112
    %p114 = scmp.ne.s32.totalorder %s102, %s103
    %p115 = scmp.eq.s32.totalorder %s16, 1
    %p116 = por %p114, %p115
    %p118 = scmp.ne.s32.totalorder %s103, %s117
    %p119 = scmp.eq.s32.totalorder %s16, 0
    %p120 = por %p118, %p119
    %s121 = ssub.s32 %s17, %s29
    %s122 = ssub.s32 %s18, %s25
    %s123 = sor.u32 %s121, %s122
    %p124 = scmp.eq.s32.totalorder %s123, 0
    %s126 = sadd.s32 %s125, 1
    %s127 = scalar_select %p124, %s125, %s126
    %p130 = pneg %p124
    %p131 = scmp.eq.s32.totalorder %s10, 1
    %p132 = por %p130, %p131
    %p133 = scmp.ne.s32.totalorder %s125, %s128
    %p134 = scmp.eq.s32.totalorder %s10, 0
    %p135 = por %p133, %p134
    %p136 = scmp.ne.s32.totalorder %s125, %s128
    %p137 = scmp.eq.s32.totalorder %s15, 1
    %p138 = por %p136, %p137
    %p139 = scmp.ne.s32.totalorder %s128, %s129
    %p140 = scmp.eq.s32.totalorder %s15, 0
    %p141 = por %p139, %p140
    %p142 = scmp.ne.s32.totalorder %s128, %s129
    %p143 = scmp.eq.s32.totalorder %s16, 1
    %p144 = por %p142, %p143
    %p146 = scmp.ne.s32.totalorder %s129, %s145
    %p147 = scmp.eq.s32.totalorder %s16, 0
    %p148 = por %p146, %p147
    %p149 = scmp.le.s32.totalorder 1, %s10
    %p150 = scmp.lt.s32.totalorder %s10, 3
    %p151 = pnand %p149, %p150
    %p152 = pneg %p151
    // Predicated region
    $region9: #{_lambda_.4} parent=5 // pred_check
      _
    $region10: #{_lambda_.4} parent=5 // pred_check_branch
      %154 = sbr.rel (%p151) target = $region12
    $region11: #{_lambda_.4} parent=5 // pred_region
      %s155 = ssub.s32 %s10, 1
      // Predicated region
      $region13: #{_lambda_.4} parent=11 // pred_check
        %p156 = pneg %p71
      $region14: #{_lambda_.4} parent=11 // pred_check_branch
        %158 = sbr.rel (%p156) target = $region16
      $region15: #{_lambda_.4} parent=11 // pred_region
        _
      $region16: #{_lambda_.4} parent=11 // pred_fallthru
        _
      // Predicated region
      $region17: #{_lambda_.4} parent=11 // pred_check
        %p159 = pneg %p92
      $region18: #{_lambda_.4} parent=11 // pred_check_branch
        %161 = sbr.rel (%p159) target = $region20
      $region19: #{_lambda_.4} parent=11 // pred_region
        _
      $region20: #{_lambda_.4} parent=11 // pred_fallthru
        _
      // Predicated region
      $region21: #{_lambda_.4} parent=11 // pred_check
        %p162 = pneg %p113
      $region22: #{_lambda_.4} parent=11 // pred_check_branch
        %164 = sbr.rel (%p162) target = $region24
      $region23: #{_lambda_.4} parent=11 // pred_region
        _
      $region24: #{_lambda_.4} parent=11 // pred_fallthru
        _
    $region12: #{_lambda_.4} parent=5 // pred_fallthru
      _
    %p165 = scmp.lt.s32.totalorder %s10, 2
    // Predicated region
    $region25: #{_lambda_.4} parent=5 // pred_check
      %p166 = pneg %p165
    $region26: #{_lambda_.4} parent=5 // pred_check_branch
      %168 = sbr.rel (%p166) target = $region28
    $region27: #{_lambda_.4} parent=5 // pred_region
      // Predicated region
      $region29: #{_lambda_.4} parent=27 // pred_check
        %p169 = pneg %p44
      $region30: #{_lambda_.4} parent=27 // pred_check_branch
        %171 = sbr.rel (%p169) target = $region32
      $region31: #{_lambda_.4} parent=27 // pred_region
        %p172 = scmp.lt.s32.totalorder %s17, 1
        %s173 = scalar_select %p172, %s17, 1
        %p174 = scmp.lt.s32.totalorder %s18, 0
        %s175 = scalar_select %p174, %s18, 0
        %s176 = smul.addr %s173, 6
        %s177 = sadd.s32 %s175, %s176
        %s178 = smul.addr %s177, 4
        %s179 = scalar_lea.vmem %s0, %s178
      $region32: #{_lambda_.4} parent=27 // pred_fallthru
        _
    $region28: #{_lambda_.4} parent=5 // pred_fallthru
      _
    %p180 = scmp.le.s32.totalorder 1, %s10
    %p181 = scmp.lt.s32.totalorder %s10, 3
    %p182 = pnand %p180, %p181
    %p183 = pneg %p182
    // Predicated region
    $region33: #{_lambda_.4} parent=5 // pred_check
      _
    $region34: #{_lambda_.4} parent=5 // pred_check_branch
      %185 = sbr.rel (%p182) target = $region36
    $region35: #{_lambda_.4} parent=5 // pred_region
      %s186 = ssub.s32 %s10, 1
      %p187 = scmp.lt.s32.totalorder %s19, 1
      %s188 = scalar_select %p187, %s19, 1
      %p189 = scmp.lt.s32.totalorder %s20, 0
      %s190 = scalar_select %p189, %s20, 0
      %s191 = smul.addr %s188, 6
      %s192 = sadd.s32 %s190, %s191
      %s193 = smul.addr %s192, 4
      %s194 = scalar_lea.vmem %s0, %s193
      %p195 = pneg %p50
      %p196 = pneg %p47
      %p197 = pneg %p71
      %p198 = pneg %p68
      %p199 = pneg %p92
      %p200 = pneg %p89
      %p201 = pneg %p113
      %p202 = pneg %p110
      %p203 = pneg %p141
      %p204 = pneg %p138
      %p205 = scmp.lt.s32.totalorder %s19, 1
      %s206 = scalar_select %p205, %s19, 1
      %p207 = scmp.lt.s32.totalorder %s20, 0
      %s208 = scalar_select %p207, %s20, 0
      %s209 = smul.addr %s206, 2
      %s210 = sadd.s32 %s208, %s209
      %s211 = smul.addr %s210, 8
      %s212 = scalar_lea.vmem %s4, %s211
      %p213 = scmp.lt.s32.totalorder %s19, 1
      %s214 = scalar_select %p213, %s19, 1
      %p215 = scmp.lt.s32.totalorder %s20, 0
      %s216 = scalar_select %p215, %s20, 0
      %s217 = smul.addr %s214, 6
      %s218 = sadd.s32 %s216, %s217
      %s219 = smul.addr %s218, 4
      %s220 = scalar_lea.vmem %s0, %s219
      %p221 = scmp.lt.s32.totalorder %s19, 1
      %s222 = scalar_select %p221, %s19, 1
      %p223 = scmp.lt.s32.totalorder %s20, 0
      %s224 = scalar_select %p223, %s20, 0
      %s225 = smul.addr %s222, 2
      %s226 = sadd.s32 %s224, %s225
      %s227 = smul.addr %s226, 8
      %s228 = scalar_lea.vmem %s4, %s227
      %v230 = vld [vmem:[%s1] sm:$0xf]
      %v231 = vld [vmem:[%s1 + $0x4] sm:$0xf]
      %v232 = vld [vmem:[%s220] sm:$0xf]
      %v233 = vld [vmem:[%s220 + $0x4] sm:$0xf]
      %v234 = vld [vmem:[%s220 + $0x8] sm:$0xf]
      %v235 = vld [vmem:[%s220 + $0xc] sm:$0xf]
      %v236 = vld [vmem:[%s220 + $0x10] sm:$0xf]
      %v237 = vld [vmem:[%s220 + $0x14] sm:$0xf]
      %v240 = vunpack.c.l.b16 %v230
      %v241 = vunpack.c.l.b16 %v231
      %v242 = vpack.c.b16 %v241, %v240
      %v249 = vunpack.c.l.b16 %v232
      %v250 = vunpack.c.l.b16 %v233
      %v251 = vunpack.c.l.b16 %v234
      %v252 = vunpack.c.l.b16 %v235
      %v253 = vunpack.c.l.b16 %v236
      %v254 = vunpack.c.l.b16 %v237
      %v255 = vpack.c.b16 %v250, %v249
      %v256 = vpack.c.b16 %v252, %v251
      %v257 = vpack.c.b16 %v254, %v253
      %vm261 = vcmask 392192
      %v263 = vsel %vm261, %v242, 0
      %265 = vmatprep.subr.bf16.mxu0 0
      %266 = vmatpush1.bf16.msra.mxu0 %v255
      %267 = vmatprep.subr.bf16.mxu0 0
      %268 = vmatpush1.bf16.msra.mxu0 %v256
      %269 = vmatprep.subr.bf16.mxu0 0
      %270 = vmatpush1.bf16.msra.mxu0 %v257
      %271 = vmatprep.subr.bf16.mxu0 0
      %272 = vmatpush1.bf16.msra.mxu0 0
      %273 = vmatprep.subr.bf16.mxu0 0
      %274 = vmatpush1.bf16.msra.mxu0 0
      %275 = vmatprep.subr.bf16.mxu0 0
      %276 = vmatpush1.bf16.msra.mxu0 0
      %277 = vmatprep.subr.bf16.mxu0 0
      %278 = vmatpush1.bf16.msra.mxu0 0
      %279 = vmatprep.subr.bf16.mxu0 0
      %280 = vmatpush1.bf16.msra.mxu0 0
      %281 = vmatprep.subr.bf16.mxu0 0
      %282 = vmatpush1.bf16.msra.mxu0 0
      %283 = vmatprep.subr.bf16.mxu0 0
      %284 = vmatpush1.bf16.msra.mxu0 0
      %285 = vmatprep.subr.bf16.mxu0 0
      %286 = vmatpush1.bf16.msra.mxu0 0
      %287 = vmatprep.subr.bf16.mxu0 0
      %288 = vmatpush1.bf16.msra.mxu0 0
      %289 = vmatprep.subr.bf16.mxu0 0
      %290 = vmatpush1.bf16.msra.mxu0 0
      %291 = vmatprep.subr.bf16.mxu0 0
      %292 = vmatpush1.bf16.msra.mxu0 0
      %293 = vmatprep.subr.bf16.mxu0 0
      %294 = vmatpush1.bf16.msra.mxu0 0
      %295 = vmatprep.subr.bf16.mxu0 0
      %296 = vmatpush1.bf16.msra.mxu0 0
      %297 = vmatprep.mubr.bf16.mxu0 0
      %298 = vmatmul.mubr.bf16.gmra.mrb[0].mxu0 %v263
      %v299 = vpop.f32.mrb[0].mxu0
      %v300 = vadd.f32 0.0, %v299
      %v301 = vpop.f32.mrb[0].mxu0
      %v302 = vpop.f32.mrb[0].mxu0
      %v303 = vadd.f32 0.0, %v302
      %v304 = vpop.f32.mrb[0].mxu0
      %305 = vdwg.mxu0
      %v306 = vld [vmem:[%s2] sm:$0xff]
      %v307 = vld [vmem:[%s2 + $0x8] sm:$0xff]
      %309 = vset.pattern.permute.xlu0 0
      %310 = vperm.xlu0 %309, %v306
      %v311 = vpop.permute.xlu0 %310
      %314 = vset.pattern.permute.xlu0 0
      %315 = vperm.xlu0 %314, %v307
      %v316 = vpop.permute.xlu0 %315
      %v318 = vmul.f32 %v300, %v311
      %v319 = vmul.f32 %v303, %v316
      %v320 = vld [vmem:[%s3] sm:$0xff]
      %v321 = vld [vmem:[%s3 + $0x8] sm:$0xff]
      %323 = vset.pattern.permute.xlu0 0
      %324 = vperm.xlu0 %323, %v320
      %v325 = vpop.permute.xlu0 %324
      %328 = vset.pattern.permute.xlu0 0
      %329 = vperm.xlu0 %328, %v321
      %v330 = vpop.permute.xlu0 %329
      %v332 = vadd.f32 %v318, %v325
      %v333 = vadd.f32 %v319, %v330
      %v334 = vmax.f32 %v332, 0.0
      %v335 = vmax.f32 %v333, 0.0
      %vm336 = vcmask 130048
      %337 = vst.msk [vmem:[%s228] sm:$0xff] %vm336, %v334
      %338 = vst.msk [vmem:[%s228 + $0x8] sm:$0xff] %vm336, %v335
      %p339 = scmp.lt.s32.totalorder %s19, 1
      %s340 = scalar_select %p339, %s19, 1
      %p341 = scmp.lt.s32.totalorder %s20, 0
      %s342 = scalar_select %p341, %s20, 0
      %s343 = smul.addr %s340, 2
      %s344 = sadd.s32 %s342, %s343
      %s345 = smul.addr %s344, 8
      %s346 = scalar_lea.vmem %s4, %s345
      // Predicated region
      $region37: #{_lambda_.4} parent=35 // pred_check
        %p347 = pneg %p138
      $region38: #{_lambda_.4} parent=35 // pred_check_branch
        %349 = sbr.rel (%p347) target = $region40
      $region39: #{_lambda_.4} parent=35 // pred_region
        _
      $region40: #{_lambda_.4} parent=35 // pred_fallthru
        _
    $region36: #{_lambda_.4} parent=5 // pred_fallthru
      _
    %p350 = scmp.le.s32.totalorder 2, %s10
    // Predicated region
    $region41: #{_lambda_.4} parent=5 // pred_check
      %p351 = pneg %p350
    $region42: #{_lambda_.4} parent=5 // pred_check_branch
      %353 = sbr.rel (%p351) target = $region44
    $region43: #{_lambda_.4} parent=5 // pred_region
      %s354 = ssub.s32 %s10, 2
      // Predicated region
      $region45: #{_lambda_.4} parent=43 // pred_check
        %p355 = pneg %p144
      $region46: #{_lambda_.4} parent=43 // pred_check_branch
        %357 = sbr.rel (%p355) target = $region48
      $region47: #{_lambda_.4} parent=43 // pred_region
        %p358 = scmp.lt.s32.totalorder %s21, 1
        %s359 = scalar_select %p358, %s21, 1
        %p360 = scmp.lt.s32.totalorder %s22, 0
        %s361 = scalar_select %p360, %s22, 0
        %s362 = smul.addr %s359, 2
        %s363 = sadd.s32 %s361, %s362
        %s364 = smul.addr %s363, 8
        %s365 = scalar_lea.vmem %s4, %s364
      $region48: #{_lambda_.4} parent=43 // pred_fallthru
        _
    $region44: #{_lambda_.4} parent=5 // pred_fallthru
      _
  $region6: #{_lambda_.4} parent=0 // loop_footer
    %s14 = sadd.s32 1, %s10
  $region7: #{_lambda_.4} parent=0 // loop_footer_branch
    %9 = sbr.rel target = $region3
  $region8: #{_lambda_.4} parent=0 // loop_exit
    _

// kernel: _lambda_.5
$region0: #{_lambda_.5}
  #allocation0 [shape = 'u32[]', space=smem, size = 0x4, offset = 0x4, fixed_abs, tag = 'smem constant byte address 0x4 - core index']
  #allocation1 [shape = 'u32[144,128]{1,0:T(1,128)}', space=vmem, size = 0x12000, scoped, tag = 'internal scratch']
  %s0 = inlined_call_operand.vmem [shape: f32[2,12,16], index: 0, kind: input, shape index: {}]
  %s1 = inlined_call_operand.vmem [shape: f32[3,16,1], index: 1, kind: input, shape index: {}]
  %s2 = inlined_call_operand.vmem [shape: f32[16,1], index: 2, kind: input, shape index: {}]
  %s3 = inlined_call_operand.hbm [shape: f32[2,16,4,16], index: 3, kind: output, shape index: {0}]
  %s4 = inlined_call_operand.vmem [shape: f32[2,16,1], index: 4, kind: output, shape index: {1}]
  %5 = xla_tuple %s3, %s4
  %s6 = sld [smem:[#allocation0]]
  $region53: #{_lambda_.5} parent=0
    _
  %s8 = ssub.s32 1, %s6
  %s9 = scalar_select 0, %s8, %s6
  $region1: #{_lambda_.5} parent=0
    #allocation2 [shape = 'u8[65536]{0}', space=vmem, size = 0x10000, scoped, tag = 'output window, operand 0']
    #allocation3 [shape = 's32[2]{0}', space=sflag, size = 0x8, scoped, tag = 'scoped memory for _lambda_.5']
    %10 = vsyncpa [#allocation3], 0
    %s11 = scalar_lea.sflag [#allocation3], 1
    %12 = vsyncpa %s11, 0
    loop: start=0, step=1, limit=4
    $region2: #{_lambda_.5} parent=1 // loop_pre_header
      _
    $region3: #{_lambda_.5} parent=1 // loop_header
      %s14 = sphi 0, %s18
      %p15 = scmp.ge.s32.totalorder %s14, 4
      %s24 = sphi 0, %s26
      %s27 = sphi 0, %s24
      %s28 = sphi 0, %s27
      %s44 = sphi 0, %s28
      %s48 = sphi 0, %s48
      %s50 = sphi 0, %s48
      %s51 = sphi 0, %s50
      %s65 = sphi 0, %s51
      %s69 = sphi 0, %s69
      %s71 = sphi 0, %s69
      %s72 = sphi 0, %s71
      %s86 = sphi 0, %s72
      %s92 = sphi 0, %s94
      %s95 = sphi 0, %s92
      %s96 = sphi 0, %s95
      %s112 = sphi 0, %s96
      %s118 = sphi 0, %s120
      %s121 = sphi 0, %s118
      %s122 = sphi 0, %s121
      %s138 = sphi 0, %s122
    $region4: #{_lambda_.5} parent=1 // loop_header_branch
      %17 = sbr.rel (%p15) target = $region8
    $region5: #{_lambda_.5} parent=1 // loop_body
      %s19 = ssub.s32 %s14, 1
      %s20 = ssub.s32 %s14, 2
      %s21 = sadd.s32 %s14, 1
      %s22 = ssub.s32 %s14, %s21
      %p23 = scmp.eq.s32.totalorder %s22, 0
      %s25 = sadd.s32 %s24, 1
      %s26 = scalar_select %p23, %s24, %s25
      %p29 = pneg %p23
      %p30 = scmp.eq.s32.totalorder %s14, 1
      %p31 = por %p29, %p30
      %p32 = scmp.ne.s32.totalorder %s24, %s27
      %p33 = scmp.eq.s32.totalorder %s14, 0
      %p34 = por %p32, %p33
      %p35 = scmp.ne.s32.totalorder %s24, %s27
      %p36 = scmp.eq.s32.totalorder %s19, 1
      %p37 = por %p35, %p36
      %p38 = scmp.ne.s32.totalorder %s27, %s28
      %p39 = scmp.eq.s32.totalorder %s19, 0
      %p40 = por %p38, %p39
      %p41 = scmp.ne.s32.totalorder %s27, %s28
      %p42 = scmp.eq.s32.totalorder %s20, 1
      %p43 = por %p41, %p42
      %p45 = scmp.ne.s32.totalorder %s28, %s44
      %p46 = scmp.eq.s32.totalorder %s20, 0
      %p47 = por %p45, %p46
      %s49 = sadd.s32 %s48, 1
      %p52 = scmp.eq.s32.totalorder %s14, 1
      %p53 = scmp.ne.s32.totalorder %s48, %s50
      %p54 = scmp.eq.s32.totalorder %s14, 0
      %p55 = por %p53, %p54
      %p56 = scmp.ne.s32.totalorder %s48, %s50
      %p57 = scmp.eq.s32.totalorder %s19, 1
      %p58 = por %p56, %p57
      %p59 = scmp.ne.s32.totalorder %s50, %s51
      %p60 = scmp.eq.s32.totalorder %s19, 0
      %p61 = por %p59, %p60
      %p62 = scmp.ne.s32.totalorder %s50, %s51
      %p63 = scmp.eq.s32.totalorder %s20, 1
      %p64 = por %p62, %p63
      %p66 = scmp.ne.s32.totalorder %s51, %s65
      %p67 = scmp.eq.s32.totalorder %s20, 0
      %p68 = por %p66, %p67
      %s70 = sadd.s32 %s69, 1
      %p73 = scmp.eq.s32.totalorder %s14, 1
      %p74 = scmp.ne.s32.totalorder %s69, %s71
      %p75 = scmp.eq.s32.totalorder %s14, 0
      %p76 = por %p74, %p75
      %p77 = scmp.ne.s32.totalorder %s69, %s71
      %p78 = scmp.eq.s32.totalorder %s19, 1
      %p79 = por %p77, %p78
      %p80 = scmp.ne.s32.totalorder %s71, %s72
      %p81 = scmp.eq.s32.totalorder %s19, 0
      %p82 = por %p80, %p81
      %p83 = scmp.ne.s32.totalorder %s71, %s72
      %p84 = scmp.eq.s32.totalorder %s20, 1
      %p85 = por %p83, %p84
      %p87 = scmp.ne.s32.totalorder %s72, %s86
      %p88 = scmp.eq.s32.totalorder %s20, 0
      %p89 = por %p87, %p88
      %s90 = ssub.s32 %s14, %s21
      %p91 = scmp.eq.s32.totalorder %s90, 0
      %s93 = sadd.s32 %s92, 1
      %s94 = scalar_select %p91, %s92, %s93
      %p97 = pneg %p91
      %p98 = scmp.eq.s32.totalorder %s14, 1
      %p99 = por %p97, %p98
      %p100 = scmp.ne.s32.totalorder %s92, %s95
      %p101 = scmp.eq.s32.totalorder %s14, 0
      %p102 = por %p100, %p101
      %p103 = scmp.ne.s32.totalorder %s92, %s95
      %p104 = scmp.eq.s32.totalorder %s19, 1
      %p105 = por %p103, %p104
      %p106 = scmp.ne.s32.totalorder %s95, %s96
      %p107 = scmp.eq.s32.totalorder %s19, 0
      %p108 = por %p106, %p107
      %p109 = scmp.ne.s32.totalorder %s95, %s96
      %p110 = scmp.eq.s32.totalorder %s20, 1
      %p111 = por %p109, %p110
      %p113 = scmp.ne.s32.totalorder %s96, %s112
      %p114 = scmp.eq.s32.totalorder %s20, 0
      %p115 = por %p113, %p114
      %s116 = ssub.s32 %s14, %s21
      %p117 = scmp.eq.s32.totalorder %s116, 0
      %s119 = sadd.s32 %s118, 1
      %s120 = scalar_select %p117, %s118, %s119
      %p123 = pneg %p117
      %p124 = scmp.eq.s32.totalorder %s14, 1
      %p125 = por %p123, %p124
      %p126 = scmp.ne.s32.totalorder %s118, %s121
      %p127 = scmp.eq.s32.totalorder %s14, 0
      %p128 = por %p126, %p127
      %p129 = scmp.ne.s32.totalorder %s118, %s121
      %p130 = scmp.eq.s32.totalorder %s19, 1
      %p131 = por %p129, %p130
      %p132 = scmp.ne.s32.totalorder %s121, %s122
      %p133 = scmp.eq.s32.totalorder %s19, 0
      %p134 = por %p132, %p133
      %p135 = scmp.ne.s32.totalorder %s121, %s122
      %p136 = scmp.eq.s32.totalorder %s20, 1
      %p137 = por %p135, %p136
      %p139 = scmp.ne.s32.totalorder %s122, %s138
      %p140 = scmp.eq.s32.totalorder %s20, 0
      %p141 = por %p139, %p140
      %p142 = scmp.le.s32.totalorder 1, %s14
      %p143 = scmp.lt.s32.totalorder %s14, 3
      %p144 = pnand %p142, %p143
      %p145 = pneg %p144
      // Predicated region
      $region9: #{_lambda_.5} parent=5 // pred_check
        _
      $region10: #{_lambda_.5} parent=5 // pred_check_branch
        %147 = sbr.rel (%p144) target = $region12
      $region11: #{_lambda_.5} parent=5 // pred_region
        %s148 = ssub.s32 %s14, 1
        // Predicated region
        $region13: #{_lambda_.5} parent=11 // pred_check
          %p149 = pneg %p61
        $region14: #{_lambda_.5} parent=11 // pred_check_branch
          %151 = sbr.rel (%p149) target = $region16
        $region15: #{_lambda_.5} parent=11 // pred_region
          _
        $region16: #{_lambda_.5} parent=11 // pred_fallthru
          _
        // Predicated region
        $region17: #{_lambda_.5} parent=11 // pred_check
          %p152 = pneg %p82
        $region18: #{_lambda_.5} parent=11 // pred_check_branch
          %154 = sbr.rel (%p152) target = $region20
        $region19: #{_lambda_.5} parent=11 // pred_region
          _
        $region20: #{_lambda_.5} parent=11 // pred_fallthru
          _
      $region12: #{_lambda_.5} parent=5 // pred_fallthru
        _
      %p155 = scmp.lt.s32.totalorder %s14, 2
      // Predicated region
      $region21: #{_lambda_.5} parent=5 // pred_check
        %p156 = pneg %p155
      $region22: #{_lambda_.5} parent=5 // pred_check_branch
        %158 = sbr.rel (%p156) target = $region24
      $region23: #{_lambda_.5} parent=5 // pred_region
        // Predicated region
        $region25: #{_lambda_.5} parent=23 // pred_check
          %p159 = pneg %p34
        $region26: #{_lambda_.5} parent=23 // pred_check_branch
          %161 = sbr.rel (%p159) target = $region28
        $region27: #{_lambda_.5} parent=23 // pred_region
          %p162 = scmp.lt.s32.totalorder %s14, 1
          %s163 = scalar_select %p162, %s14, 1
          %s164 = smul.addr %s163, 2
          %s165 = smul.addr %s164, 8
          %s166 = scalar_lea.vmem %s0, %s165
        $region28: #{_lambda_.5} parent=23 // pred_fallthru
          _
      $region24: #{_lambda_.5} parent=5 // pred_fallthru
        _
      %p167 = scmp.le.s32.totalorder 1, %s14
      %p168 = scmp.lt.s32.totalorder %s14, 3
      %p169 = pnand %p167, %p168
      %p170 = pneg %p169
      // Predicated region
      $region29: #{_lambda_.5} parent=5 // pred_check
        _
      $region30: #{_lambda_.5} parent=5 // pred_check_branch
        %172 = sbr.rel (%p169) target = $region32
      $region31: #{_lambda_.5} parent=5 // pred_region
        %s173 = ssub.s32 %s14, 1
        %p174 = scmp.lt.s32.totalorder %s19, 1
        %s175 = scalar_select %p174, %s19, 1
        %s176 = smul.addr %s175, 2
        %s177 = smul.addr %s176, 8
        %s178 = scalar_lea.vmem %s0, %s177
        %p179 = pneg %p40
        %p180 = pneg %p37
        %p181 = pneg %p61
        %p182 = pneg %p58
        %p183 = pneg %p82
        %p184 = pneg %p79
        %p185 = pneg %p108
        %p186 = pneg %p105
        %s187 = sand.u32 %s95, 1
        %s188 = scalar_lea.sflag [#allocation3], %s187
        %s189 = sand.u32 %s95, 1
        %s190 = smul.addr %s189, 64
        %s191 = scalar_lea.vmem [#allocation2], %s190
        %p192 = pneg %p134
        %p193 = pneg %p131
        %p194 = scmp.lt.s32.totalorder %s19, 1
        %s195 = scalar_select %p194, %s19, 1
        %s196 = smul.addr %s195, 2
        %s197 = smul.addr %s196, 8
        %s198 = scalar_lea.vmem %s4, %s197
        %p199 = scmp.lt.s32.totalorder %s19, 1
        %s200 = scalar_select %p199, %s19, 1
        %s201 = smul.addr %s200, 2
        %s202 = smul.addr %s201, 8
        %s203 = scalar_lea.vmem %s0, %s202
        %p204 = scmp.lt.s32.totalorder %s19, 1
        %s205 = scalar_select %p204, %s19, 1
        %s206 = smul.addr %s205, 2
        %s207 = smul.addr %s206, 8
        %s208 = scalar_lea.vmem %s4, %s207
        %v209 = vld [vmem:[%s203] sm:$0xff]
        %v210 = vld [vmem:[%s203 + $0x8] sm:$0xf]
        %v211 = vmul.f32 %v209, %v209
        %v212 = vmul.f32 %v210, %v210
        %vm213 = vcmask 130048
        %v214 = vsel %vm213, %v211, 0.0
        %215 = vadd.xlane.f32.xlu0 %v214
        %v216 = vpop.xlane.xlu0 %215
        %vm217 = vcmask 125952
        %v218 = vsel %vm217, %v212, 0.0
        %219 = vadd.xlane.f32.xlu0 %v218
        %v220 = vpop.xlane.xlu0 %219
        %v221 = vmax.f32 %v216, 1e-24
        %v222 = vmax.f32 %v220, 1e-24
        %v223 = vrsqrt.pop %v221
        %v224 = vrsqrt.pop %v222
        %v225 = vmul.f32 %v209, %v223
        %v226 = vmul.f32 %v210, %v224
        %v227 = vld [vmem:[%s2] sm:$0xff]
        %v228 = vld [vmem:[%s2 + $0x8] sm:$0xff]
        %v231 = vcombine.high %v227, %v227
        %v233 = vunpack.c.l.s4 1966171168
        %v234 = vunpack.c.0.s8 %v233
        %v235 = vlaneseq
        %v236 = vshrl.u32 %v235, 7
        %v237 = vsub.s32 %v234, %v236
        %v238 = vrot.slane %v227, %v237
        %v240 = vunpack.c.l.s4 1966171168
        %v241 = vunpack.c.0.s8 %v240
        %v242 = vlaneseq
        %v243 = vshrl.u32 %v242, 7
        %v244 = vsub.s32 %v241, %v243
        %v245 = vrot.slane %v231, %v244
        %v246 = vcombine.high %v238, %v238
        %v247 = vcombine.high %v245, %v245
        %v249 = vunpack.c.l.s4 1966171168
        %v250 = vunpack.c.0.s8 %v249
        %v251 = vlaneseq
        %v252 = vshrl.u32 %v251, 7
        %v253 = vsub.s32 %v250, %v252
        %v254 = vrot.slane %v238, %v253
        %v256 = vunpack.c.l.s4 1966171168
        %v257 = vunpack.c.0.s8 %v256
        %v258 = vlaneseq
        %v259 = vshrl.u32 %v258, 7
        %v260 = vsub.s32 %v257, %v259
        %v261 = vrot.slane %v245, %v260
        %v263 = vunpack.c.l.s4 1966171168
        %v264 = vunpack.c.0.s8 %v263
        %v265 = vlaneseq
        %v266 = vshrl.u32 %v265, 7
        %v267 = vsub.s32 %v264, %v266
        %v268 = vrot.slane %v246, %v267
        %v270 = vunpack.c.l.s4 1966171168
        %v271 = vunpack.c.0.s8 %v270
        %v272 = vlaneseq
        %v273 = vshrl.u32 %v272, 7
        %v274 = vsub.s32 %v271, %v273
        %v275 = vrot.slane %v247, %v274
        %v276 = vcombine.high %v254, %v254
        %v277 = vcombine.high %v261, %v261
        %v278 = vcombine.high %v268, %v268
        %v279 = vcombine.high %v275, %v275
        %v280 = vcombine.high %v228, %v228
        %v282 = vunpack.c.l.s4 1966171168
        %v283 = vunpack.c.0.s8 %v282
        %v284 = vlaneseq
        %v285 = vshrl.u32 %v284, 7
        %v286 = vsub.s32 %v283, %v285
        %v287 = vrot.slane %v228, %v286
        %v289 = vunpack.c.l.s4 1966171168
        %v290 = vunpack.c.0.s8 %v289
        %v291 = vlaneseq
        %v292 = vshrl.u32 %v291, 7
        %v293 = vsub.s32 %v290, %v292
        %v294 = vrot.slane %v280, %v293
        %v295 = vcombine.high %v287, %v287
        %v296 = vcombine.high %v294, %v294
        %v298 = vunpack.c.l.s4 1966171168
        %v299 = vunpack.c.0.s8 %v298
        %v300 = vlaneseq
        %v301 = vshrl.u32 %v300, 7
        %v302 = vsub.s32 %v299, %v301
        %v303 = vrot.slane %v287, %v302
        %v305 = vunpack.c.l.s4 1966171168
        %v306 = vunpack.c.0.s8 %v305
        %v307 = vlaneseq
        %v308 = vshrl.u32 %v307, 7
        %v309 = vsub.s32 %v306, %v308
        %v310 = vrot.slane %v294, %v309
        %v312 = vunpack.c.l.s4 1966171168
        %v313 = vunpack.c.0.s8 %v312
        %v314 = vlaneseq
        %v315 = vshrl.u32 %v314, 7
        %v316 = vsub.s32 %v313, %v315
        %v317 = vrot.slane %v295, %v316
        %v319 = vunpack.c.l.s4 1966171168
        %v320 = vunpack.c.0.s8 %v319
        %v321 = vlaneseq
        %v322 = vshrl.u32 %v321, 7
        %v323 = vsub.s32 %v320, %v322
        %v324 = vrot.slane %v296, %v323
        %v325 = vcombine.high %v303, %v303
        %v326 = vcombine.high %v310, %v310
        %v327 = vcombine.high %v317, %v317
        %v328 = vcombine.high %v324, %v324
        %v329 = vld [vmem:[%s1] sm:$0xff]
        %v330 = vld [vmem:[%s1 + $0x8] sm:$0xff]
        %v333 = vcombine.high %v329, %v329
        %v335 = vunpack.c.l.s4 1966171168
        %v336 = vunpack.c.0.s8 %v335
        %v337 = vlaneseq
        %v338 = vshrl.u32 %v337, 7
        %v339 = vsub.s32 %v336, %v338
        %v340 = vrot.slane %v329, %v339
        %v342 = vunpack.c.l.s4 1966171168
        %v343 = vunpack.c.0.s8 %v342
        %v344 = vlaneseq
        %v345 = vshrl.u32 %v344, 7
        %v346 = vsub.s32 %v343, %v345
        %v347 = vrot.slane %v333, %v346
        %v348 = vcombine.high %v340, %v340
        %v349 = vcombine.high %v347, %v347
        %v351 = vunpack.c.l.s4 1966171168
        %v352 = vunpack.c.0.s8 %v351
        %v353 = vlaneseq
        %v354 = vshrl.u32 %v353, 7
        %v355 = vsub.s32 %v352, %v354
        %v356 = vrot.slane %v340, %v355
        %v358 = vunpack.c.l.s4 1966171168
        %v359 = vunpack.c.0.s8 %v358
        %v360 = vlaneseq
        %v361 = vshrl.u32 %v360, 7
        %v362 = vsub.s32 %v359, %v361
        %v363 = vrot.slane %v347, %v362
        %v365 = vunpack.c.l.s4 1966171168
        %v366 = vunpack.c.0.s8 %v365
        %v367 = vlaneseq
        %v368 = vshrl.u32 %v367, 7
        %v369 = vsub.s32 %v366, %v368
        %v370 = vrot.slane %v348, %v369
        %v372 = vunpack.c.l.s4 1966171168
        %v373 = vunpack.c.0.s8 %v372
        %v374 = vlaneseq
        %v375 = vshrl.u32 %v374, 7
        %v376 = vsub.s32 %v373, %v375
        %v377 = vrot.slane %v349, %v376
        %v378 = vcombine.high %v356, %v356
        %v379 = vcombine.high %v363, %v363
        %v380 = vcombine.high %v370, %v370
        %v381 = vcombine.high %v377, %v377
        %v382 = vcombine.high %v330, %v330
        %v384 = vunpack.c.l.s4 1966171168
        %v385 = vunpack.c.0.s8 %v384
        %v386 = vlaneseq
        %v387 = vshrl.u32 %v386, 7
        %v388 = vsub.s32 %v385, %v387
        %v389 = vrot.slane %v330, %v388
        %v391 = vunpack.c.l.s4 1966171168
        %v392 = vunpack.c.0.s8 %v391
        %v393 = vlaneseq
        %v394 = vshrl.u32 %v393, 7
        %v395 = vsub.s32 %v392, %v394
        %v396 = vrot.slane %v382, %v395
        %v397 = vcombine.high %v389, %v389
        %v398 = vcombine.high %v396, %v396
        %v400 = vunpack.c.l.s4 1966171168
        %v401 = vunpack.c.0.s8 %v400
        %v402 = vlaneseq
        %v403 = vshrl.u32 %v402, 7
        %v404 = vsub.s32 %v401, %v403
        %v405 = vrot.slane %v389, %v404
        %v407 = vunpack.c.l.s4 1966171168
        %v408 = vunpack.c.0.s8 %v407
        %v409 = vlaneseq
        %v410 = vshrl.u32 %v409, 7
        %v411 = vsub.s32 %v408, %v410
        %v412 = vrot.slane %v396, %v411
        %v414 = vunpack.c.l.s4 1966171168
        %v415 = vunpack.c.0.s8 %v414
        %v416 = vlaneseq
        %v417 = vshrl.u32 %v416, 7
        %v418 = vsub.s32 %v415, %v417
        %v419 = vrot.slane %v397, %v418
        %v421 = vunpack.c.l.s4 1966171168
        %v422 = vunpack.c.0.s8 %v421
        %v423 = vlaneseq
        %v424 = vshrl.u32 %v423, 7
        %v425 = vsub.s32 %v422, %v424
        %v426 = vrot.slane %v398, %v425
        %v427 = vcombine.high %v405, %v405
        %v428 = vcombine.high %v412, %v412
        %v429 = vcombine.high %v419, %v419
        %v430 = vcombine.high %v426, %v426
        %v431 = vlaneseq
        %v432 = vshrl.u32 %v431, 7
        %v433 = vsub.s32 0, %v432
        %v434 = vrot.slane %v356, %v433
        %v435 = vlaneseq
        %v436 = vshrl.u32 %v435, 7
        %v437 = vsub.s32 0, %v436
        %v438 = vrot.slane %v370, %v437
        %v439 = vlaneseq
        %v440 = vshrl.u32 %v439, 7
        %v441 = vsub.s32 0, %v440
        %v442 = vrot.slane %v378, %v441
        %v443 = vlaneseq
        %v444 = vshrl.u32 %v443, 7
        %v445 = vsub.s32 0, %v444
        %v446 = vrot.slane %v380, %v445
        %v447 = vlaneseq
        %v448 = vshrl.u32 %v447, 7
        %v449 = vsub.s32 0, %v448
        %v450 = vrot.slane %v363, %v449
        %v451 = vlaneseq
        %v452 = vshrl.u32 %v451, 7
        %v453 = vsub.s32 0, %v452
        %v454 = vrot.slane %v377, %v453
        %v455 = vlaneseq
        %v456 = vshrl.u32 %v455, 7
        %v457 = vsub.s32 0, %v456
        %v458 = vrot.slane %v379, %v457
        %v459 = vlaneseq
        %v460 = vshrl.u32 %v459, 7
        %v461 = vsub.s32 0, %v460
        %v462 = vrot.slane %v381, %v461
        %v463 = vlaneseq
        %v464 = vshrl.u32 %v463, 7
        %v465 = vsub.s32 0, %v464
        %v466 = vrot.slane %v405, %v465
        %v467 = vlaneseq
        %v468 = vshrl.u32 %v467, 7
        %v469 = vsub.s32 0, %v468
        %v470 = vrot.slane %v419, %v469
        %v471 = vlaneseq
        %v472 = vshrl.u32 %v471, 7
        %v473 = vsub.s32 0, %v472
        %v474 = vrot.slane %v427, %v473
        %v475 = vlaneseq
        %v476 = vshrl.u32 %v475, 7
        %v477 = vsub.s32 0, %v476
        %v478 = vrot.slane %v429, %v477
        %v479 = vlaneseq
        %v480 = vshrl.u32 %v479, 7
        %v481 = vsub.s32 0, %v480
        %v482 = vrot.slane %v412, %v481
        %v483 = vlaneseq
        %v484 = vshrl.u32 %v483, 7
        %v485 = vsub.s32 0, %v484
        %v486 = vrot.slane %v426, %v485
        %v487 = vlaneseq
        %v488 = vshrl.u32 %v487, 7
        %v489 = vsub.s32 0, %v488
        %v490 = vrot.slane %v428, %v489
        %v491 = vlaneseq
        %v492 = vshrl.u32 %v491, 7
        %v493 = vsub.s32 0, %v492
        %v494 = vrot.slane %v430, %v493
        %495 = vset.pattern.permute.xlu0 0
        %496 = vperm.xlu0 %495, %v434
        %v497 = vpop.permute.xlu0 %496
        %499 = vset.pattern.permute.xlu0 0
        %500 = vperm.xlu0 %499, %v438
        %v501 = vpop.permute.xlu0 %500
        %503 = vset.pattern.permute.xlu0 0
        %504 = vperm.xlu0 %503, %v442
        %v505 = vpop.permute.xlu0 %504
        %507 = vset.pattern.permute.xlu0 0
        %508 = vperm.xlu0 %507, %v446
        %v509 = vpop.permute.xlu0 %508
        %511 = vset.pattern.permute.xlu0 0
        %512 = vperm.xlu0 %511, %v450
        %v513 = vpop.permute.xlu0 %512
        %515 = vset.pattern.permute.xlu0 0
        %516 = vperm.xlu0 %515, %v454
        %v517 = vpop.permute.xlu0 %516
        %519 = vset.pattern.permute.xlu0 0
        %520 = vperm.xlu0 %519, %v458
        %v521 = vpop.permute.xlu0 %520
        %523 = vset.pattern.permute.xlu0 0
        %524 = vperm.xlu0 %523, %v462
        %v525 = vpop.permute.xlu0 %524
        %527 = vset.pattern.permute.xlu0 0
        %528 = vperm.xlu0 %527, %v466
        %v529 = vpop.permute.xlu0 %528
        %531 = vset.pattern.permute.xlu0 0
        %532 = vperm.xlu0 %531, %v470
        %v533 = vpop.permute.xlu0 %532
        %535 = vset.pattern.permute.xlu0 0
        %536 = vperm.xlu0 %535, %v474
        %v537 = vpop.permute.xlu0 %536
        %539 = vset.pattern.permute.xlu0 0
        %540 = vperm.xlu0 %539, %v478
        %v541 = vpop.permute.xlu0 %540
        %543 = vset.pattern.permute.xlu0 0
        %544 = vperm.xlu0 %543, %v482
        %v545 = vpop.permute.xlu0 %544
        %547 = vset.pattern.permute.xlu0 0
        %548 = vperm.xlu0 %547, %v486
        %v549 = vpop.permute.xlu0 %548
        %551 = vset.pattern.permute.xlu0 0
        %552 = vperm.xlu0 %551, %v490
        %v553 = vpop.permute.xlu0 %552
        %555 = vset.pattern.permute.xlu0 0
        %556 = vperm.xlu0 %555, %v494
        %v557 = vpop.permute.xlu0 %556
        %v559 = vmul.f32 %v497, %v225
        %v560 = vmul.f32 %v501, %v225
        %v561 = vmul.f32 %v505, %v225
        %v562 = vmul.f32 %v509, %v225
        %v563 = vmul.f32 %v513, %v225
        %v564 = vmul.f32 %v517, %v225
        %v565 = vmul.f32 %v521, %v225
        %v566 = vmul.f32 %v525, %v225
        %v567 = vmul.f32 %v529, %v225
        %v568 = vmul.f32 %v533, %v225
        %v569 = vmul.f32 %v537, %v225
        %v570 = vmul.f32 %v541, %v225
        %v571 = vmul.f32 %v545, %v225
        %v572 = vmul.f32 %v549, %v225
        %v573 = vmul.f32 %v553, %v225
        %v574 = vmul.f32 %v557, %v225
        %v575 = vlaneseq
        %v576 = vshrl.u32 %v575, 7
        %v577 = vsub.s32 0, %v576
        %v578 = vrot.slane %v254, %v577
        %v579 = vlaneseq
        %v580 = vshrl.u32 %v579, 7
        %v581 = vsub.s32 0, %v580
        %v582 = vrot.slane %v268, %v581
        %v583 = vlaneseq
        %v584 = vshrl.u32 %v583, 7
        %v585 = vsub.s32 0, %v584
        %v586 = vrot.slane %v276, %v585
        %v587 = vlaneseq
        %v588 = vshrl.u32 %v587, 7
        %v589 = vsub.s32 0, %v588
        %v590 = vrot.slane %v278, %v589
        %v591 = vlaneseq
        %v592 = vshrl.u32 %v591, 7
        %v593 = vsub.s32 0, %v592
        %v594 = vrot.slane %v261, %v593
        %v595 = vlaneseq
        %v596 = vshrl.u32 %v595, 7
        %v597 = vsub.s32 0, %v596
        %v598 = vrot.slane %v275, %v597
        %v599 = vlaneseq
        %v600 = vshrl.u32 %v599, 7
        %v601 = vsub.s32 0, %v600
        %v602 = vrot.slane %v277, %v601
        %v603 = vlaneseq
        %v604 = vshrl.u32 %v603, 7
        %v605 = vsub.s32 0, %v604
        %v606 = vrot.slane %v279, %v605
        %v607 = vlaneseq
        %v608 = vshrl.u32 %v607, 7
        %v609 = vsub.s32 0, %v608
        %v610 = vrot.slane %v303, %v609
        %v611 = vlaneseq
        %v612 = vshrl.u32 %v611, 7
        %v613 = vsub.s32 0, %v612
        %v614 = vrot.slane %v317, %v613
        %v615 = vlaneseq
        %v616 = vshrl.u32 %v615, 7
        %v617 = vsub.s32 0, %v616
        %v618 = vrot.slane %v325, %v617
        %v619 = vlaneseq
        %v620 = vshrl.u32 %v619, 7
        %v621 = vsub.s32 0, %v620
        %v622 = vrot.slane %v327, %v621
        %v623 = vlaneseq
        %v624 = vshrl.u32 %v623, 7
        %v625 = vsub.s32 0, %v624
        %v626 = vrot.slane %v310, %v625
        %v627 = vlaneseq
        %v628 = vshrl.u32 %v627, 7
        %v629 = vsub.s32 0, %v628
        %v630 = vrot.slane %v324, %v629
        %v631 = vlaneseq
        %v632 = vshrl.u32 %v631, 7
        %v633 = vsub.s32 0, %v632
        %v634 = vrot.slane %v326, %v633
        %v635 = vlaneseq
        %v636 = vshrl.u32 %v635, 7
        %v637 = vsub.s32 0, %v636
        %v638 = vrot.slane %v328, %v637
        %639 = vset.pattern.permute.xlu0 0
        %640 = vperm.xlu0 %639, %v578
        %v641 = vpop.permute.xlu0 %640
        %643 = vset.pattern.permute.xlu0 0
        %644 = vperm.xlu0 %643, %v582
        %v645 = vpop.permute.xlu0 %644
        %647 = vset.pattern.permute.xlu0 0
        %648 = vperm.xlu0 %647, %v586
        %v649 = vpop.permute.xlu0 %648
        %651 = vset.pattern.permute.xlu0 0
        %652 = vperm.xlu0 %651, %v590
        %v653 = vpop.permute.xlu0 %652
        %655 = vset.pattern.permute.xlu0 0
        %656 = vperm.xlu0 %655, %v594
        %v657 = vpop.permute.xlu0 %656
        %659 = vset.pattern.permute.xlu0 0
        %660 = vperm.xlu0 %659, %v598
        %v661 = vpop.permute.xlu0 %660
        %663 = vset.pattern.permute.xlu0 0
        %664 = vperm.xlu0 %663, %v602
        %v665 = vpop.permute.xlu0 %664
        %667 = vset.pattern.permute.xlu0 0
        %668 = vperm.xlu0 %667, %v606
        %v669 = vpop.permute.xlu0 %668
        %671 = vset.pattern.permute.xlu0 0
        %672 = vperm.xlu0 %671, %v610
        %v673 = vpop.permute.xlu0 %672
        %675 = vset.pattern.permute.xlu0 0
        %676 = vperm.xlu0 %675, %v614
        %v677 = vpop.permute.xlu0 %676
        %679 = vset.pattern.permute.xlu0 0
        %680 = vperm.xlu0 %679, %v618
        %v681 = vpop.permute.xlu0 %680
        %683 = vset.pattern.permute.xlu0 0
        %684 = vperm.xlu0 %683, %v622
        %v685 = vpop.permute.xlu0 %684
        %687 = vset.pattern.permute.xlu0 0
        %688 = vperm.xlu0 %687, %v626
        %v689 = vpop.permute.xlu0 %688
        %691 = vset.pattern.permute.xlu0 0
        %692 = vperm.xlu0 %691, %v630
        %v693 = vpop.permute.xlu0 %692
        %695 = vset.pattern.permute.xlu0 0
        %696 = vperm.xlu0 %695, %v634
        %v697 = vpop.permute.xlu0 %696
        %699 = vset.pattern.permute.xlu0 0
        %700 = vperm.xlu0 %699, %v638
        %v701 = vpop.permute.xlu0 %700
        %v703 = vadd.f32 %v641, %v559
        %v704 = vadd.f32 %v645, %v560
        %v705 = vadd.f32 %v649, %v561
        %v706 = vadd.f32 %v653, %v562
        %v707 = vadd.f32 %v657, %v563
        %v708 = vadd.f32 %v661, %v564
        %v709 = vadd.f32 %v665, %v565
        %v710 = vadd.f32 %v669, %v566
        %v711 = vadd.f32 %v673, %v567
        %v712 = vadd.f32 %v677, %v568
        %v713 = vadd.f32 %v681, %v569
        %v714 = vadd.f32 %v685, %v570
        %v715 = vadd.f32 %v689, %v571
        %v716 = vadd.f32 %v693, %v572
        %v717 = vadd.f32 %v697, %v573
        %v718 = vadd.f32 %v701, %v574
        %s719 = scalar_lea.vmem %s1, 16
        %v720 = vld [vmem:[%s719] sm:$0xff]
        %v721 = vld [vmem:[%s719 + $0x8] sm:$0xff]
        %v724 = vcombine.high %v720, %v720
        %v726 = vunpack.c.l.s4 1966171168
        %v727 = vunpack.c.0.s8 %v726
        %v728 = vlaneseq
        %v729 = vshrl.u32 %v728, 7
        %v730 = vsub.s32 %v727, %v729
        %v731 = vrot.slane %v720, %v730
        %v733 = vunpack.c.l.s4 1966171168
        %v734 = vunpack.c.0.s8 %v733
        %v735 = vlaneseq
        %v736 = vshrl.u32 %v735, 7
        %v737 = vsub.s32 %v734, %v736
        %v738 = vrot.slane %v724, %v737
        %v739 = vcombine.high %v731, %v731
        %v740 = vcombine.high %v738, %v738
        %v742 = vunpack.c.l.s4 1966171168
        %v743 = vunpack.c.0.s8 %v742
        %v744 = vlaneseq
        %v745 = vshrl.u32 %v744, 7
        %v746 = vsub.s32 %v743, %v745
        %v747 = vrot.slane %v731, %v746
        %v749 = vunpack.c.l.s4 1966171168
        %v750 = vunpack.c.0.s8 %v749
        %v751 = vlaneseq
        %v752 = vshrl.u32 %v751, 7
        %v753 = vsub.s32 %v750, %v752
        %v754 = vrot.slane %v738, %v753
        %v756 = vunpack.c.l.s4 1966171168
        %v757 = vunpack.c.0.s8 %v756
        %v758 = vlaneseq
        %v759 = vshrl.u32 %v758, 7
        %v760 = vsub.s32 %v757, %v759
        %v761 = vrot.slane %v739, %v760
        %v763 = vunpack.c.l.s4 1966171168
        %v764 = vunpack.c.0.s8 %v763
        %v765 = vlaneseq
        %v766 = vshrl.u32 %v765, 7
        %v767 = vsub.s32 %v764, %v766
        %v768 = vrot.slane %v740, %v767
        %v769 = vcombine.high %v747, %v747
        %v770 = vcombine.high %v754, %v754
        %v771 = vcombine.high %v761, %v761
        %v772 = vcombine.high %v768, %v768
        %v773 = vcombine.high %v721, %v721
        %v775 = vunpack.c.l.s4 1966171168
        %v776 = vunpack.c.0.s8 %v775
        %v777 = vlaneseq
        %v778 = vshrl.u32 %v777, 7
        %v779 = vsub.s32 %v776, %v778
        %v780 = vrot.slane %v721, %v779
        %v782 = vunpack.c.l.s4 1966171168
        %v783 = vunpack.c.0.s8 %v782
        %v784 = vlaneseq
        %v785 = vshrl.u32 %v784, 7
        %v786 = vsub.s32 %v783, %v785
        %v787 = vrot.slane %v773, %v786
        %v788 = vcombine.high %v780, %v780
        %v789 = vcombine.high %v787, %v787
        %v791 = vunpack.c.l.s4 1966171168
        %v792 = vunpack.c.0.s8 %v791
        %v793 = vlaneseq
        %v794 = vshrl.u32 %v793, 7
        %v795 = vsub.s32 %v792, %v794
        %v796 = vrot.slane %v780, %v795
        %v798 = vunpack.c.l.s4 1966171168
        %v799 = vunpack.c.0.s8 %v798
        %v800 = vlaneseq
        %v801 = vshrl.u32 %v800, 7
        %v802 = vsub.s32 %v799, %v801
        %v803 = vrot.slane %v787, %v802
        %v805 = vunpack.c.l.s4 1966171168
        %v806 = vunpack.c.0.s8 %v805
        %v807 = vlaneseq
        %v808 = vshrl.u32 %v807, 7
        %v809 = vsub.s32 %v806, %v808
        %v810 = vrot.slane %v788, %v809
        %v812 = vunpack.c.l.s4 1966171168
        %v813 = vunpack.c.0.s8 %v812
        %v814 = vlaneseq
        %v815 = vshrl.u32 %v814, 7
        %v816 = vsub.s32 %v813, %v815
        %v817 = vrot.slane %v789, %v816
        %v818 = vcombine.high %v796, %v796
        %v819 = vcombine.high %v803, %v803
        %v820 = vcombine.high %v810, %v810
        %v821 = vcombine.high %v817, %v817
        %v822 = vlaneseq
        %v823 = vshrl.u32 %v822, 7
        %v824 = vsub.s32 0, %v823
        %v825 = vrot.slane %v747, %v824
        %v826 = vlaneseq
        %v827 = vshrl.u32 %v826, 7
        %v828 = vsub.s32 0, %v827
        %v829 = vrot.slane %v761, %v828
        %v830 = vlaneseq
        %v831 = vshrl.u32 %v830, 7
        %v832 = vsub.s32 0, %v831
        %v833 = vrot.slane %v769, %v832
        %v834 = vlaneseq
        %v835 = vshrl.u32 %v834, 7
        %v836 = vsub.s32 0, %v835
        %v837 = vrot.slane %v771, %v836
        %v838 = vlaneseq
        %v839 = vshrl.u32 %v838, 7
        %v840 = vsub.s32 0, %v839
        %v841 = vrot.slane %v754, %v840
        %v842 = vlaneseq
        %v843 = vshrl.u32 %v842, 7
        %v844 = vsub.s32 0, %v843
        %v845 = vrot.slane %v768, %v844
        %v846 = vlaneseq
        %v847 = vshrl.u32 %v846, 7
        %v848 = vsub.s32 0, %v847
        %v849 = vrot.slane %v770, %v848
        %v850 = vlaneseq
        %v851 = vshrl.u32 %v850, 7
        %v852 = vsub.s32 0, %v851
        %v853 = vrot.slane %v772, %v852
        %v854 = vlaneseq
        %v855 = vshrl.u32 %v854, 7
        %v856 = vsub.s32 0, %v855
        %v857 = vrot.slane %v796, %v856
        %v858 = vlaneseq
        %v859 = vshrl.u32 %v858, 7
        %v860 = vsub.s32 0, %v859
        %v861 = vrot.slane %v810, %v860
        %v862 = vlaneseq
        %v863 = vshrl.u32 %v862, 7
        %v864 = vsub.s32 0, %v863
        %v865 = vrot.slane %v818, %v864
        %v866 = vlaneseq
        %v867 = vshrl.u32 %v866, 7
        %v868 = vsub.s32 0, %v867
        %v869 = vrot.slane %v820, %v868
        %v870 = vlaneseq
        %v871 = vshrl.u32 %v870, 7
        %v872 = vsub.s32 0, %v871
        %v873 = vrot.slane %v803, %v872
        %v874 = vlaneseq
        %v875 = vshrl.u32 %v874, 7
        %v876 = vsub.s32 0, %v875
        %v877 = vrot.slane %v817, %v876
        %v878 = vlaneseq
        %v879 = vshrl.u32 %v878, 7
        %v880 = vsub.s32 0, %v879
        %v881 = vrot.slane %v819, %v880
        %v882 = vlaneseq
        %v883 = vshrl.u32 %v882, 7
        %v884 = vsub.s32 0, %v883
        %v885 = vrot.slane %v821, %v884
        %886 = vset.pattern.permute.xlu0 0
        %887 = vperm.xlu0 %886, %v825
        %v888 = vpop.permute.xlu0 %887
        %890 = vset.pattern.permute.xlu0 0
        %891 = vperm.xlu0 %890, %v829
        %v892 = vpop.permute.xlu0 %891
        %894 = vset.pattern.permute.xlu0 0
        %895 = vperm.xlu0 %894, %v833
        %v896 = vpop.permute.xlu0 %895
        %898 = vset.pattern.permute.xlu0 0
        %899 = vperm.xlu0 %898, %v837
        %v900 = vpop.permute.xlu0 %899
        %902 = vset.pattern.permute.xlu0 0
        %903 = vperm.xlu0 %902, %v841
        %v904 = vpop.permute.xlu0 %903
        %906 = vset.pattern.permute.xlu0 0
        %907 = vperm.xlu0 %906, %v845
        %v908 = vpop.permute.xlu0 %907
        %910 = vset.pattern.permute.xlu0 0
        %911 = vperm.xlu0 %910, %v849
        %v912 = vpop.permute.xlu0 %911
        %914 = vset.pattern.permute.xlu0 0
        %915 = vperm.xlu0 %914, %v853
        %v916 = vpop.permute.xlu0 %915
        %918 = vset.pattern.permute.xlu0 0
        %919 = vperm.xlu0 %918, %v857
        %v920 = vpop.permute.xlu0 %919
        %922 = vset.pattern.permute.xlu0 0
        %923 = vperm.xlu0 %922, %v861
        %v924 = vpop.permute.xlu0 %923
        %926 = vset.pattern.permute.xlu0 0
        %927 = vperm.xlu0 %926, %v865
        %v928 = vpop.permute.xlu0 %927
        %930 = vset.pattern.permute.xlu0 0
        %931 = vperm.xlu0 %930, %v869
        %v932 = vpop.permute.xlu0 %931
        %934 = vset.pattern.permute.xlu0 0
        %935 = vperm.xlu0 %934, %v873
        %v936 = vpop.permute.xlu0 %935
        %938 = vset.pattern.permute.xlu0 0
        %939 = vperm.xlu0 %938, %v877
        %v940 = vpop.permute.xlu0 %939
        %942 = vset.pattern.permute.xlu0 0
        %943 = vperm.xlu0 %942, %v881
        %v944 = vpop.permute.xlu0 %943
        %946 = vset.pattern.permute.xlu0 0
        %947 = vperm.xlu0 %946, %v885
        %v948 = vpop.permute.xlu0 %947
        %v950 = vmul.f32 %v888, %v225
        %v951 = vmul.f32 %v892, %v225
        %v952 = vmul.f32 %v896, %v225
        %v953 = vmul.f32 %v900, %v225
        %v954 = vmul.f32 %v904, %v225
        %v955 = vmul.f32 %v908, %v225
        %v956 = vmul.f32 %v912, %v225
        %v957 = vmul.f32 %v916, %v225
        %v958 = vmul.f32 %v920, %v225
        %v959 = vmul.f32 %v924, %v225
        %v960 = vmul.f32 %v928, %v225
        %v961 = vmul.f32 %v932, %v225
        %v962 = vmul.f32 %v936, %v225
        %v963 = vmul.f32 %v940, %v225
        %v964 = vmul.f32 %v944, %v225
        %v965 = vmul.f32 %v948, %v225
        %v982 = vrot.slane %v950, 4
        %v983 = vrot.slane %v951, 4
        %v984 = vrot.slane %v952, 4
        %v985 = vrot.slane %v953, 4
        %v986 = vrot.slane %v954, 4
        %v987 = vrot.slane %v955, 4
        %v988 = vrot.slane %v956, 4
        %v989 = vrot.slane %v957, 4
        %v990 = vrot.slane %v958, 4
        %v991 = vrot.slane %v959, 4
        %v992 = vrot.slane %v960, 4
        %v993 = vrot.slane %v961, 4
        %v994 = vrot.slane %v962, 4
        %v995 = vrot.slane %v963, 4
        %v996 = vrot.slane %v964, 4
        %v997 = vrot.slane %v965, 4
        %v1014 = vadd.f32 %v703, %v982
        %v1015 = vadd.f32 %v704, %v983
        %v1016 = vadd.f32 %v705, %v984
        %v1017 = vadd.f32 %v706, %v985
        %v1018 = vadd.f32 %v707, %v986
        %v1019 = vadd.f32 %v708, %v987
        %v1020 = vadd.f32 %v709, %v988
        %v1021 = vadd.f32 %v710, %v989
        %v1022 = vadd.f32 %v711, %v990
        %v1023 = vadd.f32 %v712, %v991
        %v1024 = vadd.f32 %v713, %v992
        %v1025 = vadd.f32 %v714, %v993
        %v1026 = vadd.f32 %v715, %v994
        %v1027 = vadd.f32 %v716, %v995
        %v1028 = vadd.f32 %v717, %v996
        %v1029 = vadd.f32 %v718, %v997
        %s1030 = scalar_lea.vmem %s1, 32
        %v1031 = vld [vmem:[%s1030] sm:$0xff]
        %v1032 = vld [vmem:[%s1030 + $0x8] sm:$0xff]
        %v1035 = vcombine.high %v1031, %v1031
        %v1037 = vunpack.c.l.s4 1966171168
        %v1038 = vunpack.c.0.s8 %v1037
        %v1039 = vlaneseq
        %v1040 = vshrl.u32 %v1039, 7
        %v1041 = vsub.s32 %v1038, %v1040
        %v1042 = vrot.slane %v1031, %v1041
        %v1044 = vunpack.c.l.s4 1966171168
        %v1045 = vunpack.c.0.s8 %v1044
        %v1046 = vlaneseq
        %v1047 = vshrl.u32 %v1046, 7
        %v1048 = vsub.s32 %v1045, %v1047
        %v1049 = vrot.slane %v1035, %v1048
        %v1050 = vcombine.high %v1042, %v1042
        %v1051 = vcombine.high %v1049, %v1049
        %v1053 = vunpack.c.l.s4 1966171168
        %v1054 = vunpack.c.0.s8 %v1053
        %v1055 = vlaneseq
        %v1056 = vshrl.u32 %v1055, 7
        %v1057 = vsub.s32 %v1054, %v1056
        %v1058 = vrot.slane %v1042, %v1057
        %v1060 = vunpack.c.l.s4 1966171168
        %v1061 = vunpack.c.0.s8 %v1060
        %v1062 = vlaneseq
        %v1063 = vshrl.u32 %v1062, 7
        %v1064 = vsub.s32 %v1061, %v1063
        %v1065 = vrot.slane %v1049, %v1064
        %v1067 = vunpack.c.l.s4 1966171168
        %v1068 = vunpack.c.0.s8 %v1067
        %v1069 = vlaneseq
        %v1070 = vshrl.u32 %v1069, 7
        %v1071 = vsub.s32 %v1068, %v1070
        %v1072 = vrot.slane %v1050, %v1071
        %v1074 = vunpack.c.l.s4 1966171168
        %v1075 = vunpack.c.0.s8 %v1074
        %v1076 = vlaneseq
        %v1077 = vshrl.u32 %v1076, 7
        %v1078 = vsub.s32 %v1075, %v1077
        %v1079 = vrot.slane %v1051, %v1078
        %v1080 = vcombine.high %v1058, %v1058
        %v1081 = vcombine.high %v1065, %v1065
        %v1082 = vcombine.high %v1072, %v1072
        %v1083 = vcombine.high %v1079, %v1079
        %v1084 = vcombine.high %v1032, %v1032
        %v1086 = vunpack.c.l.s4 1966171168
        %v1087 = vunpack.c.0.s8 %v1086
        %v1088 = vlaneseq
        %v1089 = vshrl.u32 %v1088, 7
        %v1090 = vsub.s32 %v1087, %v1089
        %v1091 = vrot.slane %v1032, %v1090
        %v1093 = vunpack.c.l.s4 1966171168
        %v1094 = vunpack.c.0.s8 %v1093
        %v1095 = vlaneseq
        %v1096 = vshrl.u32 %v1095, 7
        %v1097 = vsub.s32 %v1094, %v1096
        %v1098 = vrot.slane %v1084, %v1097
        %v1099 = vcombine.high %v1091, %v1091
        %v1100 = vcombine.high %v1098, %v1098
        %v1102 = vunpack.c.l.s4 1966171168
        %v1103 = vunpack.c.0.s8 %v1102
        %v1104 = vlaneseq
        %v1105 = vshrl.u32 %v1104, 7
        %v1106 = vsub.s32 %v1103, %v1105
        %v1107 = vrot.slane %v1091, %v1106
        %v1109 = vunpack.c.l.s4 1966171168
        %v1110 = vunpack.c.0.s8 %v1109
        %v1111 = vlaneseq
        %v1112 = vshrl.u32 %v1111, 7
        %v1113 = vsub.s32 %v1110, %v1112
        %v1114 = vrot.slane %v1098, %v1113
        %v1116 = vunpack.c.l.s4 1966171168
        %v1117 = vunpack.c.0.s8 %v1116
        %v1118 = vlaneseq
        %v1119 = vshrl.u32 %v1118, 7
        %v1120 = vsub.s32 %v1117, %v1119
        %v1121 = vrot.slane %v1099, %v1120
        %v1123 = vunpack.c.l.s4 1966171168
        %v1124 = vunpack.c.0.s8 %v1123
        %v1125 = vlaneseq
        %v1126 = vshrl.u32 %v1125, 7
        %v1127 = vsub.s32 %v1124, %v1126
        %v1128 = vrot.slane %v1100, %v1127
        %v1129 = vcombine.high %v1107, %v1107
        %v1130 = vcombine.high %v1114, %v1114
        %v1131 = vcombine.high %v1121, %v1121
        %v1132 = vcombine.high %v1128, %v1128
        %v1133 = vlaneseq
        %v1134 = vshrl.u32 %v1133, 7
        %v1135 = vsub.s32 0, %v1134
        %v1136 = vrot.slane %v1058, %v1135
        %v1137 = vlaneseq
        %v1138 = vshrl.u32 %v1137, 7
        %v1139 = vsub.s32 0, %v1138
        %v1140 = vrot.slane %v1072, %v1139
        %v1141 = vlaneseq
        %v1142 = vshrl.u32 %v1141, 7
        %v1143 = vsub.s32 0, %v1142
        %v1144 = vrot.slane %v1080, %v1143
        %v1145 = vlaneseq
        %v1146 = vshrl.u32 %v1145, 7
        %v1147 = vsub.s32 0, %v1146
        %v1148 = vrot.slane %v1082, %v1147
        %v1149 = vlaneseq
        %v1150 = vshrl.u32 %v1149, 7
        %v1151 = vsub.s32 0, %v1150
        %v1152 = vrot.slane %v1065, %v1151
        %v1153 = vlaneseq
        %v1154 = vshrl.u32 %v1153, 7
        %v1155 = vsub.s32 0, %v1154
        %v1156 = vrot.slane %v1079, %v1155
        %v1157 = vlaneseq
        %v1158 = vshrl.u32 %v1157, 7
        %v1159 = vsub.s32 0, %v1158
        %v1160 = vrot.slane %v1081, %v1159
        %v1161 = vlaneseq
        %v1162 = vshrl.u32 %v1161, 7
        %v1163 = vsub.s32 0, %v1162
        %v1164 = vrot.slane %v1083, %v1163
        %v1165 = vlaneseq
        %v1166 = vshrl.u32 %v1165, 7
        %v1167 = vsub.s32 0, %v1166
        %v1168 = vrot.slane %v1107, %v1167
        %v1169 = vlaneseq
        %v1170 = vshrl.u32 %v1169, 7
        %v1171 = vsub.s32 0, %v1170
        %v1172 = vrot.slane %v1121, %v1171
        %v1173 = vlaneseq
        %v1174 = vshrl.u32 %v1173, 7
        %v1175 = vsub.s32 0, %v1174
        %v1176 = vrot.slane %v1129, %v1175
        %v1177 = vlaneseq
        %v1178 = vshrl.u32 %v1177, 7
        %v1179 = vsub.s32 0, %v1178
        %v1180 = vrot.slane %v1131, %v1179
        %v1181 = vlaneseq
        %v1182 = vshrl.u32 %v1181, 7
        %v1183 = vsub.s32 0, %v1182
        %v1184 = vrot.slane %v1114, %v1183
        %v1185 = vlaneseq
        %v1186 = vshrl.u32 %v1185, 7
        %v1187 = vsub.s32 0, %v1186
        %v1188 = vrot.slane %v1128, %v1187
        %v1189 = vlaneseq
        %v1190 = vshrl.u32 %v1189, 7
        %v1191 = vsub.s32 0, %v1190
        %v1192 = vrot.slane %v1130, %v1191
        %v1193 = vlaneseq
        %v1194 = vshrl.u32 %v1193, 7
        %v1195 = vsub.s32 0, %v1194
        %v1196 = vrot.slane %v1132, %v1195
        %1197 = vset.pattern.permute.xlu0 0
        %1198 = vperm.xlu0 %1197, %v1136
        %v1199 = vpop.permute.xlu0 %1198
        %1201 = vset.pattern.permute.xlu0 0
        %1202 = vperm.xlu0 %1201, %v1140
        %v1203 = vpop.permute.xlu0 %1202
        %1205 = vset.pattern.permute.xlu0 0
        %1206 = vperm.xlu0 %1205, %v1144
        %v1207 = vpop.permute.xlu0 %1206
        %1209 = vset.pattern.permute.xlu0 0
        %1210 = vperm.xlu0 %1209, %v1148
        %v1211 = vpop.permute.xlu0 %1210
        %1213 = vset.pattern.permute.xlu0 0
        %1214 = vperm.xlu0 %1213, %v1152
        %v1215 = vpop.permute.xlu0 %1214
        %1217 = vset.pattern.permute.xlu0 0
        %1218 = vperm.xlu0 %1217, %v1156
        %v1219 = vpop.permute.xlu0 %1218
        %1221 = vset.pattern.permute.xlu0 0
        %1222 = vperm.xlu0 %1221, %v1160
        %v1223 = vpop.permute.xlu0 %1222
        %1225 = vset.pattern.permute.xlu0 0
        %1226 = vperm.xlu0 %1225, %v1164
        %v1227 = vpop.permute.xlu0 %1226
        %1229 = vset.pattern.permute.xlu0 0
        %1230 = vperm.xlu0 %1229, %v1168
        %v1231 = vpop.permute.xlu0 %1230
        %1233 = vset.pattern.permute.xlu0 0
        %1234 = vperm.xlu0 %1233, %v1172
        %v1235 = vpop.permute.xlu0 %1234
        %1237 = vset.pattern.permute.xlu0 0
        %1238 = vperm.xlu0 %1237, %v1176
        %v1239 = vpop.permute.xlu0 %1238
        %1241 = vset.pattern.permute.xlu0 0
        %1242 = vperm.xlu0 %1241, %v1180
        %v1243 = vpop.permute.xlu0 %1242
        %1245 = vset.pattern.permute.xlu0 0
        %1246 = vperm.xlu0 %1245, %v1184
        %v1247 = vpop.permute.xlu0 %1246
        %1249 = vset.pattern.permute.xlu0 0
        %1250 = vperm.xlu0 %1249, %v1188
        %v1251 = vpop.permute.xlu0 %1250
        %1253 = vset.pattern.permute.xlu0 0
        %1254 = vperm.xlu0 %1253, %v1192
        %v1255 = vpop.permute.xlu0 %1254
        %1257 = vset.pattern.permute.xlu0 0
        %1258 = vperm.xlu0 %1257, %v1196
        %v1259 = vpop.permute.xlu0 %1258
        %v1261 = vmul.f32 %v1199, %v226
        %v1262 = vmul.f32 %v1203, %v226
        %v1263 = vmul.f32 %v1207, %v226
        %v1264 = vmul.f32 %v1211, %v226
        %v1265 = vmul.f32 %v1215, %v226
        %v1266 = vmul.f32 %v1219, %v226
        %v1267 = vmul.f32 %v1223, %v226
        %v1268 = vmul.f32 %v1227, %v226
        %v1269 = vmul.f32 %v1231, %v226
        %v1270 = vmul.f32 %v1235, %v226
        %v1271 = vmul.f32 %v1239, %v226
        %v1272 = vmul.f32 %v1243, %v226
        %v1273 = vmul.f32 %v1247, %v226
        %v1274 = vmul.f32 %v1251, %v226
        %v1275 = vmul.f32 %v1255, %v226
        %v1276 = vmul.f32 %v1259, %v226
        %v1277 = vadd.f32 %v1014, %v1261
        %v1278 = vadd.f32 %v1015, %v1262
        %v1279 = vadd.f32 %v1016, %v1263
        %v1280 = vadd.f32 %v1017, %v1264
        %v1281 = vadd.f32 %v1018, %v1265
        %v1282 = vadd.f32 %v1019, %v1266
        %v1283 = vadd.f32 %v1020, %v1267
        %v1284 = vadd.f32 %v1021, %v1268
        %v1285 = vadd.f32 %v1022, %v1269
        %v1286 = vadd.f32 %v1023, %v1270
        %v1287 = vadd.f32 %v1024, %v1271
        %v1288 = vadd.f32 %v1025, %v1272
        %v1289 = vadd.f32 %v1026, %v1273
        %v1290 = vadd.f32 %v1027, %v1274
        %v1291 = vadd.f32 %v1028, %v1275
        %v1292 = vadd.f32 %v1029, %v1276
        %v1293 = vmax.f32 %v1277, 0.0
        %v1294 = vmax.f32 %v1278, 0.0
        %v1295 = vmax.f32 %v1279, 0.0
        %v1296 = vmax.f32 %v1280, 0.0
        %v1297 = vmax.f32 %v1281, 0.0
        %v1298 = vmax.f32 %v1282, 0.0
        %v1299 = vmax.f32 %v1283, 0.0
        %v1300 = vmax.f32 %v1284, 0.0
        %v1301 = vmax.f32 %v1285, 0.0
        %v1302 = vmax.f32 %v1286, 0.0
        %v1303 = vmax.f32 %v1287, 0.0
        %v1304 = vmax.f32 %v1288, 0.0
        %v1305 = vmax.f32 %v1289, 0.0
        %v1306 = vmax.f32 %v1290, 0.0
        %v1307 = vmax.f32 %v1291, 0.0
        %v1308 = vmax.f32 %v1292, 0.0
        %1309 = vst.msk [vmem:[%s191] sm:$0xf] %vm217, %v1293
        %1310 = vst.msk [vmem:[%s191 + $0x4] sm:$0xf] %vm217, %v1294
        %1311 = vst.msk [vmem:[%s191 + $0x8] sm:$0xf] %vm217, %v1295
        %1312 = vst.msk [vmem:[%s191 + $0xc] sm:$0xf] %vm217, %v1296
        %1313 = vst.msk [vmem:[%s191 + $0x10] sm:$0xf] %vm217, %v1297
        %1314 = vst.msk [vmem:[%s191 + $0x14] sm:$0xf] %vm217, %v1298
        %1315 = vst.msk [vmem:[%s191 + $0x18] sm:$0xf] %vm217, %v1299
        %1316 = vst.msk [vmem:[%s191 + $0x1c] sm:$0xf] %vm217, %v1300
        %1317 = vst.msk [vmem:[%s191 + $0x20] sm:$0xf] %vm217, %v1301
        %1318 = vst.msk [vmem:[%s191 + $0x24] sm:$0xf] %vm217, %v1302
        %1319 = vst.msk [vmem:[%s191 + $0x28] sm:$0xf] %vm217, %v1303
        %1320 = vst.msk [vmem:[%s191 + $0x2c] sm:$0xf] %vm217, %v1304
        %1321 = vst.msk [vmem:[%s191 + $0x30] sm:$0xf] %vm217, %v1305
        %1322 = vst.msk [vmem:[%s191 + $0x34] sm:$0xf] %vm217, %v1306
        %1323 = vst.msk [vmem:[%s191 + $0x38] sm:$0xf] %vm217, %v1307
        %1324 = vst.msk [vmem:[%s191 + $0x3c] sm:$0xf] %vm217, %v1308
        %v1325 = vsel %vm217, %v1293, -inf
        %1326 = vmax.xlane.f32.xlu0 %v1325
        %v1327 = vpop.xlane.xlu0 %1326
        %v1328 = vsel %vm217, %v1294, -inf
        %1329 = vmax.xlane.f32.xlu0 %v1328
        %v1330 = vpop.xlane.xlu0 %1329
        %v1331 = vsel %vm217, %v1295, -inf
        %1332 = vmax.xlane.f32.xlu0 %v1331
        %v1333 = vpop.xlane.xlu0 %1332
        %v1334 = vsel %vm217, %v1296, -inf
        %1335 = vmax.xlane.f32.xlu0 %v1334
        %v1336 = vpop.xlane.xlu0 %1335
        %v1337 = vsel %vm217, %v1297, -inf
        %1338 = vmax.xlane.f32.xlu0 %v1337
        %v1339 = vpop.xlane.xlu0 %1338
        %v1340 = vsel %vm217, %v1298, -inf
        %1341 = vmax.xlane.f32.xlu0 %v1340
        %v1342 = vpop.xlane.xlu0 %1341
        %v1343 = vsel %vm217, %v1299, -inf
        %1344 = vmax.xlane.f32.xlu0 %v1343
        %v1345 = vpop.xlane.xlu0 %1344
        %v1346 = vsel %vm217, %v1300, -inf
        %1347 = vmax.xlane.f32.xlu0 %v1346
        %v1348 = vpop.xlane.xlu0 %1347
        %v1349 = vsel %vm217, %v1301, -inf
        %1350 = vmax.xlane.f32.xlu0 %v1349
        %v1351 = vpop.xlane.xlu0 %1350
        %v1352 = vsel %vm217, %v1302, -inf
        %1353 = vmax.xlane.f32.xlu0 %v1352
        %v1354 = vpop.xlane.xlu0 %1353
        %v1355 = vsel %vm217, %v1303, -inf
        %1356 = vmax.xlane.f32.xlu0 %v1355
        %v1357 = vpop.xlane.xlu0 %1356
        %v1358 = vsel %vm217, %v1304, -inf
        %1359 = vmax.xlane.f32.xlu0 %v1358
        %v1360 = vpop.xlane.xlu0 %1359
        %v1361 = vsel %vm217, %v1305, -inf
        %1362 = vmax.xlane.f32.xlu0 %v1361
        %v1363 = vpop.xlane.xlu0 %1362
        %v1364 = vsel %vm217, %v1306, -inf
        %1365 = vmax.xlane.f32.xlu0 %v1364
        %v1366 = vpop.xlane.xlu0 %1365
        %v1367 = vsel %vm217, %v1307, -inf
        %1368 = vmax.xlane.f32.xlu0 %v1367
        %v1369 = vpop.xlane.xlu0 %1368
        %v1370 = vsel %vm217, %v1308, -inf
        %1371 = vmax.xlane.f32.xlu0 %v1370
        %v1372 = vpop.xlane.xlu0 %1371
        %v1389 = vlaneseq
        %v1390 = vand.u32 %v1389, 127
        %v1391 = vlaneseq
        %v1392 = vshrl.u32 %v1391, 7
        %v1393 = vsub.s32 %v1390, %v1392
        %v1394 = vrot.slane %v1327, %v1393
        %v1395 = vlaneseq
        %v1396 = vshrl.u32 %v1395, 7
        %v1397 = vsub.s32 %v1390, %v1396
        %v1398 = vrot.slane %v1330, %v1397
        %v1399 = vlaneseq
        %v1400 = vshrl.u32 %v1399, 7
        %v1401 = vsub.s32 %v1390, %v1400
        %v1402 = vrot.slane %v1333, %v1401
        %v1403 = vlaneseq
        %v1404 = vshrl.u32 %v1403, 7
        %v1405 = vsub.s32 %v1390, %v1404
        %v1406 = vrot.slane %v1336, %v1405
        %v1407 = vlaneseq
        %v1408 = vshrl.u32 %v1407, 7
        %v1409 = vsub.s32 %v1390, %v1408
        %v1410 = vrot.slane %v1339, %v1409
        %v1411 = vlaneseq
        %v1412 = vshrl.u32 %v1411, 7
        %v1413 = vsub.s32 %v1390, %v1412
        %v1414 = vrot.slane %v1342, %v1413
        %v1415 = vlaneseq
        %v1416 = vshrl.u32 %v1415, 7
        %v1417 = vsub.s32 %v1390, %v1416
        %v1418 = vrot.slane %v1345, %v1417
        %v1419 = vlaneseq
        %v1420 = vshrl.u32 %v1419, 7
        %v1421 = vsub.s32 %v1390, %v1420
        %v1422 = vrot.slane %v1348, %v1421
        %v1423 = vlaneseq
        %v1424 = vshrl.u32 %v1423, 7
        %v1425 = vsub.s32 %v1390, %v1424
        %v1426 = vrot.slane %v1351, %v1425
        %v1427 = vlaneseq
        %v1428 = vshrl.u32 %v1427, 7
        %v1429 = vsub.s32 %v1390, %v1428
        %v1430 = vrot.slane %v1354, %v1429
        %v1431 = vlaneseq
        %v1432 = vshrl.u32 %v1431, 7
        %v1433 = vsub.s32 %v1390, %v1432
        %v1434 = vrot.slane %v1357, %v1433
        %v1435 = vlaneseq
        %v1436 = vshrl.u32 %v1435, 7
        %v1437 = vsub.s32 %v1390, %v1436
        %v1438 = vrot.slane %v1360, %v1437
        %v1439 = vlaneseq
        %v1440 = vshrl.u32 %v1439, 7
        %v1441 = vsub.s32 %v1390, %v1440
        %v1442 = vrot.slane %v1363, %v1441
        %v1443 = vlaneseq
        %v1444 = vshrl.u32 %v1443, 7
        %v1445 = vsub.s32 %v1390, %v1444
        %v1446 = vrot.slane %v1366, %v1445
        %v1447 = vlaneseq
        %v1448 = vshrl.u32 %v1447, 7
        %v1449 = vsub.s32 %v1390, %v1448
        %v1450 = vrot.slane %v1369, %v1449
        %v1451 = vlaneseq
        %v1452 = vshrl.u32 %v1451, 7
        %v1453 = vsub.s32 %v1390, %v1452
        %v1454 = vrot.slane %v1372, %v1453
        %vm1455 = vcmask 1041409
        %v1456 = vsel %vm1455, %v1398, %v1394
        %vm1457 = vcmask 1042434
        %v1458 = vsel %vm1457, %v1402, %v1456
        %vm1459 = vcmask 1043459
        %v1460 = vsel %vm1459, %v1406, %v1458
        %vm1461 = vcmask 1044484
        %v1462 = vsel %vm1461, %v1410, %v1460
        %vm1463 = vcmask 1045509
        %v1464 = vsel %vm1463, %v1414, %v1462
        %vm1465 = vcmask 1046534
        %v1466 = vsel %vm1465, %v1418, %v1464
        %vm1467 = vcmask 1047559
        %v1468 = vsel %vm1467, %v1422, %v1466
        %v1469 = vsel %vm1455, %v1430, %v1426
        %v1470 = vsel %vm1457, %v1434, %v1469
        %v1471 = vsel %vm1459, %v1438, %v1470
        %v1472 = vsel %vm1461, %v1442, %v1471
        %v1473 = vsel %vm1463, %v1446, %v1472
        %v1474 = vsel %vm1465, %v1450, %v1473
        %v1475 = vsel %vm1467, %v1454, %v1474
        %vm1478 = vcmask 31744
        %v1479 = vsel %vm1478, %v1468, -inf
        %1480 = vmax.xlane.f32.xlu0 %v1479
        %v1481 = vpop.xlane.xlu0 %1480
        %v1482 = vsel %vm1478, %v1475, -inf
        %1483 = vmax.xlane.f32.xlu0 %v1482
        %v1484 = vpop.xlane.xlu0 %1483
        %v1485 = vsel %vm217, %v1293, 0.0
        %1486 = vadd.xlane.f32.xlu0 %v1485
        %v1487 = vpop.xlane.xlu0 %1486
        %v1488 = vsel %vm217, %v1294, 0.0
        %1489 = vadd.xlane.f32.xlu0 %v1488
        %v1490 = vpop.xlane.xlu0 %1489
        %v1491 = vsel %vm217, %v1295, 0.0
        %1492 = vadd.xlane.f32.xlu0 %v1491
        %v1493 = vpop.xlane.xlu0 %1492
        %v1494 = vsel %vm217, %v1296, 0.0
        %1495 = vadd.xlane.f32.xlu0 %v1494
        %v1496 = vpop.xlane.xlu0 %1495
        %v1497 = vsel %vm217, %v1297, 0.0
        %1498 = vadd.xlane.f32.xlu0 %v1497
        %v1499 = vpop.xlane.xlu0 %1498
        %v1500 = vsel %vm217, %v1298, 0.0
        %1501 = vadd.xlane.f32.xlu0 %v1500
        %v1502 = vpop.xlane.xlu0 %1501
        %v1503 = vsel %vm217, %v1299, 0.0
        %1504 = vadd.xlane.f32.xlu0 %v1503
        %v1505 = vpop.xlane.xlu0 %1504
        %v1506 = vsel %vm217, %v1300, 0.0
        %1507 = vadd.xlane.f32.xlu0 %v1506
        %v1508 = vpop.xlane.xlu0 %1507
        %v1509 = vsel %vm217, %v1301, 0.0
        %1510 = vadd.xlane.f32.xlu0 %v1509
        %v1511 = vpop.xlane.xlu0 %1510
        %v1512 = vsel %vm217, %v1302, 0.0
        %1513 = vadd.xlane.f32.xlu0 %v1512
        %v1514 = vpop.xlane.xlu0 %1513
        %v1515 = vsel %vm217, %v1303, 0.0
        %1516 = vadd.xlane.f32.xlu0 %v1515
        %v1517 = vpop.xlane.xlu0 %1516
        %v1518 = vsel %vm217, %v1304, 0.0
        %1519 = vadd.xlane.f32.xlu0 %v1518
        %v1520 = vpop.xlane.xlu0 %1519
        %v1521 = vsel %vm217, %v1305, 0.0
        %1522 = vadd.xlane.f32.xlu0 %v1521
        %v1523 = vpop.xlane.xlu0 %1522
        %v1524 = vsel %vm217, %v1306, 0.0
        %1525 = vadd.xlane.f32.xlu0 %v1524
        %v1526 = vpop.xlane.xlu0 %1525
        %v1527 = vsel %vm217, %v1307, 0.0
        %1528 = vadd.xlane.f32.xlu0 %v1527
        %v1529 = vpop.xlane.xlu0 %1528
        %v1530 = vsel %vm217, %v1308, 0.0
        %1531 = vadd.xlane.f32.xlu0 %v1530
        %v1532 = vpop.xlane.xlu0 %1531
        %v1549 = vlaneseq
        %v1550 = vshrl.u32 %v1549, 7
        %v1551 = vsub.s32 %v1390, %v1550
        %v1552 = vrot.slane %v1487, %v1551
        %v1553 = vlaneseq
        %v1554 = vshrl.u32 %v1553, 7
        %v1555 = vsub.s32 %v1390, %v1554
        %v1556 = vrot.slane %v1490, %v1555
        %v1557 = vlaneseq
        %v1558 = vshrl.u32 %v1557, 7
        %v1559 = vsub.s32 %v1390, %v1558
        %v1560 = vrot.slane %v1493, %v1559
        %v1561 = vlaneseq
        %v1562 = vshrl.u32 %v1561, 7
        %v1563 = vsub.s32 %v1390, %v1562
        %v1564 = vrot.slane %v1496, %v1563
        %v1565 = vlaneseq
        %v1566 = vshrl.u32 %v1565, 7
        %v1567 = vsub.s32 %v1390, %v1566
        %v1568 = vrot.slane %v1499, %v1567
        %v1569 = vlaneseq
        %v1570 = vshrl.u32 %v1569, 7
        %v1571 = vsub.s32 %v1390, %v1570
        %v1572 = vrot.slane %v1502, %v1571
        %v1573 = vlaneseq
        %v1574 = vshrl.u32 %v1573, 7
        %v1575 = vsub.s32 %v1390, %v1574
        %v1576 = vrot.slane %v1505, %v1575
        %v1577 = vlaneseq
        %v1578 = vshrl.u32 %v1577, 7
        %v1579 = vsub.s32 %v1390, %v1578
        %v1580 = vrot.slane %v1508, %v1579
        %v1581 = vlaneseq
        %v1582 = vshrl.u32 %v1581, 7
        %v1583 = vsub.s32 %v1390, %v1582
        %v1584 = vrot.slane %v1511, %v1583
        %v1585 = vlaneseq
        %v1586 = vshrl.u32 %v1585, 7
        %v1587 = vsub.s32 %v1390, %v1586
        %v1588 = vrot.slane %v1514, %v1587
        %v1589 = vlaneseq
        %v1590 = vshrl.u32 %v1589, 7
        %v1591 = vsub.s32 %v1390, %v1590
        %v1592 = vrot.slane %v1517, %v1591
        %v1593 = vlaneseq
        %v1594 = vshrl.u32 %v1593, 7
        %v1595 = vsub.s32 %v1390, %v1594
        %v1596 = vrot.slane %v1520, %v1595
        %v1597 = vlaneseq
        %v1598 = vshrl.u32 %v1597, 7
        %v1599 = vsub.s32 %v1390, %v1598
        %v1600 = vrot.slane %v1523, %v1599
        %v1601 = vlaneseq
        %v1602 = vshrl.u32 %v1601, 7
        %v1603 = vsub.s32 %v1390, %v1602
        %v1604 = vrot.slane %v1526, %v1603
        %v1605 = vlaneseq
        %v1606 = vshrl.u32 %v1605, 7
        %v1607 = vsub.s32 %v1390, %v1606
        %v1608 = vrot.slane %v1529, %v1607
        %v1609 = vlaneseq
        %v1610 = vshrl.u32 %v1609, 7
        %v1611 = vsub.s32 %v1390, %v1610
        %v1612 = vrot.slane %v1532, %v1611
        %v1613 = vsel %vm1455, %v1556, %v1552
        %v1614 = vsel %vm1457, %v1560, %v1613
        %v1615 = vsel %vm1459, %v1564, %v1614
        %v1616 = vsel %vm1461, %v1568, %v1615
        %v1617 = vsel %vm1463, %v1572, %v1616
        %v1618 = vsel %vm1465, %v1576, %v1617
        %v1619 = vsel %vm1467, %v1580, %v1618
        %v1620 = vsel %vm1455, %v1588, %v1584
        %v1621 = vsel %vm1457, %v1592, %v1620
        %v1622 = vsel %vm1459, %v1596, %v1621
        %v1623 = vsel %vm1461, %v1600, %v1622
        %v1624 = vsel %vm1463, %v1604, %v1623
        %v1625 = vsel %vm1465, %v1608, %v1624
        %v1626 = vsel %vm1467, %v1612, %v1625
        %v1629 = vsel %vm1478, %v1619, 0.0
        %1630 = vadd.xlane.f32.xlu0 %v1629
        %v1631 = vpop.xlane.xlu0 %1630
        %v1632 = vsel %vm1478, %v1626, 0.0
        %1633 = vadd.xlane.f32.xlu0 %v1632
        %v1634 = vpop.xlane.xlu0 %1633
        %v1635 = vmul.f32 %v1631, 0.015625
        %v1636 = vmul.f32 %v1634, 0.015625
        %v1637 = vadd.f32 %v1481, %v1635
        %v1638 = vadd.f32 %v1484, %v1636
        %v1639 = vmul.f32 %v1637, %v1637
        %v1640 = vmul.f32 %v1638, %v1638
        %v1641 = vadd.f32 %v1639, %v1640
        %v1642 = vrot.slane %v1641, 4
        %v1643 = vadd.f32 %v1641, %v1642
        %v1644 = vrot.slane %v1643, 2
        %v1645 = vadd.f32 %v1643, %v1644
        %v1646 = vrot.slane %v1645, 1
        %v1647 = vadd.f32 %v1645, %v1646
        %v1648 = vmax.f32 %v1647, 1e-24
        %v1649 = vrsqrt.pop %v1648
        %v1650 = vmul.f32 %v1637, %v1649
        %v1651 = vmul.f32 %v1638, %v1649
        %vm1652 = vcmask 7168
        %1653 = vst.msk [vmem:[%s208] sm:$0xff] %vm1652, %v1650
        %1654 = vst.msk [vmem:[%s208 + $0x8] sm:$0xff] %vm1652, %v1651
        %s1655 = sand.u32 %s95, 1
        %s1656 = scalar_lea.sflag [#allocation3], %s1655
        %s1657 = sand.u32 %s95, 1
        %s1658 = smul.addr %s1657, 64
        %s1659 = scalar_lea.vmem [#allocation2], %s1658
        %p1660 = scmp.lt.s32.totalorder %s19, 1
        %s1661 = scalar_select %p1660, %s19, 1
        %s1662 = smul.addr %s1661, 2
        %s1663 = smul.addr %s1662, 8
        %s1664 = scalar_lea.vmem %s4, %s1663
        // Predicated region
        $region33: #{_lambda_.5} parent=31 // pred_check
          %p1665 = pneg %p105
        $region34: #{_lambda_.5} parent=31 // pred_check_branch
          %1667 = sbr.rel (%p1665) target = $region36
        $region35: #{_lambda_.5} parent=31 // pred_region
          %s1669 = ssub.s32 1024, 1024
          %1670 = vsyncadd %s1656, %s1669
          %s1671 = smul.addr %s19, 16
          %s1672 = smul.addr %s1671, 64
          %s1673 = scalar_lea.hbm %s3, %s1672
          %s1674 = sshll.u32 %s1659, 4
          %s1675 = int_to_ptr.vmem [resolvable:$true] %s1674
          %1680 = dma.vmem_to_hbm [thread:$0]  %s1675, 1024, %s1673, %s1656, 64, 64, 4
        $region36: #{_lambda_.5} parent=31 // pred_fallthru
          _
        // Predicated region
        $region37: #{_lambda_.5} parent=31 // pred_check
          %p1681 = pneg %p131
        $region38: #{_lambda_.5} parent=31 // pred_check_branch
          %1683 = sbr.rel (%p1681) target = $region40
        $region39: #{_lambda_.5} parent=31 // pred_region
          _
        $region40: #{_lambda_.5} parent=31 // pred_fallthru
          _
      $region32: #{_lambda_.5} parent=5 // pred_fallthru
        _
      %p1684 = scmp.le.s32.totalorder 2, %s14
      // Predicated region
      $region41: #{_lambda_.5} parent=5 // pred_check
        %p1685 = pneg %p1684
      $region42: #{_lambda_.5} parent=5 // pred_check_branch
        %1687 = sbr.rel (%p1685) target = $region44
      $region43: #{_lambda_.5} parent=5 // pred_region
        %s1688 = ssub.s32 %s14, 2
        // Predicated region
        $region45: #{_lambda_.5} parent=43 // pred_check
          %p1689 = pneg %p111
        $region46: #{_lambda_.5} parent=43 // pred_check_branch
          %1691 = sbr.rel (%p1689) target = $region48
        $region47: #{_lambda_.5} parent=43 // pred_region
          %s1692 = sand.u32 %s96, 1
          %s1693 = scalar_lea.sflag [#allocation3], %s1692
          %s1694 = sand.u32 %s96, 1
          %s1695 = smul.addr %s1694, 64
          %s1696 = scalar_lea.vmem [#allocation2], %s1695
          %1697 = dma.done %s1693, 1024
        $region48: #{_lambda_.5} parent=43 // pred_fallthru
          _
        // Predicated region
        $region49: #{_lambda_.5} parent=43 // pred_check
          %p1698 = pneg %p137
        $region50: #{_lambda_.5} parent=43 // pred_check_branch
          %1700 = sbr.rel (%p1698) target = $region52
        $region51: #{_lambda_.5} parent=43 // pred_region
          %p1701 = scmp.lt.s32.totalorder %s20, 1
          %s1702 = scalar_select %p1701, %s20, 1
          %s1703 = smul.addr %s1702, 2
          %s1704 = smul.addr %s1703, 8
          %s1705 = scalar_lea.vmem %s4, %s1704
        $region52: #{_lambda_.5} parent=43 // pred_fallthru
          _
      $region44: #{_lambda_.5} parent=5 // pred_fallthru
        _
    $region6: #{_lambda_.5} parent=1 // loop_footer
      %s18 = sadd.s32 1, %s14
    $region7: #{_lambda_.5} parent=1 // loop_footer_branch
      %13 = sbr.rel target = $region3
    $region8: #{_lambda_.5} parent=1 // loop_exit
      _
    %1706 = vsyncpa [#allocation3], 1
    %s1707 = scalar_lea.sflag [#allocation3], 1
    %1708 = vsyncpa %s1707, 1

</llo_original>
